<compile_context>
chip_gen: v7x
topology: tpu7x:2x2x1
jax: 0.10.0
libtpu: 0.0.40
codegen_flags: <defaults>
</compile_context>

<pallas_src>
import functools
import math

import jax
import jax.numpy as jnp
from jax.experimental import pallas as pl

D_MODEL = 32
NHEAD = 4
DFF = 64
HEAD_DIM = D_MODEL // NHEAD
EPS = 1e-5

# packed parameter order passed to the kernel
PARAM_NAMES = ["wqkv", "bqkv", "wo_w2", "w1", "b1", "vecs"]


def _ln(x, gamma, beta):
    mu = jnp.mean(x, axis=-1, keepdims=True)
    var = jnp.mean((x - mu) ** 2, axis=-1, keepdims=True)
    return (x - mu) * jax.lax.rsqrt(var + EPS) * gamma + beta


def encoder_layer_kernel(x_ref, wqkv_ref, bqkv_ref, wo_w2_ref, w1_ref, b1_ref,
                         vecs_ref, out_ref, attn_ref, *, B, S):
    D = D_MODEL
    x = x_ref[...]                                               # (B*S, D) float32

    # ---- fused QKV projection: one (B*S, D) x (D, 3D) MXU matmul ----
    qkv = jnp.dot(x, wqkv_ref[...], preferred_element_type=jnp.float32) + bqkv_ref[...]

    scale = 1.0 / math.sqrt(HEAD_DIM)
    q3 = (qkv[:, :D] * scale).reshape(B, S, D)                   # (B, S, D)
    k3 = qkv[:, D:2 * D].reshape(B, S, D)
    v3 = qkv[:, 2 * D:].reshape(B, S, D)

    def stack_heads(t3):
        # (B, S, D) -> (NHEAD*B, S, HEAD_DIM), head-major along the leading (cheap) axis
        return jnp.concatenate(
            [t3[:, :, h * HEAD_DIM:(h + 1) * HEAD_DIM] for h in range(NHEAD)], axis=0)

    qh = stack_heads(q3)                                         # (H*B, S, Hd)
    kh = stack_heads(k3)
    vh = stack_heads(v3)

    # ---- attention: batched over (head * batch) in single dot_generals, one softmax ----
    s = jax.lax.dot_general(qh, kh, (((2,), (2,)), ((0,), (0,))),
                            preferred_element_type=jnp.float32)  # (H*B, S, S)
    s = s - jnp.max(s, axis=-1, keepdims=True)
    e = jnp.exp(s)
    p = e * pl.reciprocal(jnp.sum(e, axis=-1, keepdims=True))    # exact reciprocal-multiply

    # head-averaged attention weights (PyTorch MultiheadAttention default): (B, S, S)
    attn_sum = p[0:B]
    for h in range(1, NHEAD):
        attn_sum = attn_sum + p[h * B:(h + 1) * B]
    attn_ref[...] = attn_sum * (1.0 / NHEAD)

    ctx = jax.lax.dot_general(p, vh, (((2,), (1,)), ((0,), (0,))),
                              preferred_element_type=jnp.float32)  # (H*B, S, Hd)
    ctx = jnp.concatenate([ctx[h * B:(h + 1) * B] for h in range(NHEAD)],
                          axis=-1).reshape(B * S, D)             # (B*S, D)

    # packed params: wo_w2 = [wo (D,D) ; w2 (DFF,D)], vecs rows = bo, b2, g1, beta1, g2, beta2
    wo = wo_w2_ref[0:D, :]
    w2 = wo_w2_ref[D:, :]
    vecs = vecs_ref[...]

    attn_out = jnp.dot(ctx, wo, preferred_element_type=jnp.float32) + vecs[0:1, :]

    # ---- residual + LayerNorm 1 (dropout = 0 -> identity) ----
    h1n = _ln(x + attn_out, vecs[2:3, :], vecs[3:4, :])

    # ---- feed-forward: linear2(relu(linear1(x))) ----
    ff = jnp.dot(h1n, w1_ref[...], preferred_element_type=jnp.float32) + b1_ref[...]
    ff = jnp.maximum(ff, 0.0)
    ff = jnp.dot(ff, w2, preferred_element_type=jnp.float32) + vecs[1:2, :]

    # ---- residual + LayerNorm 2 ----
    out_ref[...] = _ln(h1n + ff, vecs[4:5, :], vecs[5:6, :])


def transformer_encoder_layer(src, P):
    """src: (S, B, D) float32 (PyTorch seq-first). Returns (out (S, B, D), attn (B, S, S))."""
    S, B, D = src.shape
    x_flat = jnp.transpose(src, (1, 0, 2)).reshape(B * S, D)

    out_flat, attn = pl.pallas_call(
        functools.partial(encoder_layer_kernel, B=B, S=S),
        out_shape=(jax.ShapeDtypeStruct((B * S, D), jnp.float32),
                   jax.ShapeDtypeStruct((B, S, S), jnp.float32)),
    )(x_flat, *[P[n] for n in PARAM_NAMES])

    out = jnp.transpose(out_flat.reshape(B, S, D), (1, 0, 2))    # back to (S, B, D)
    return out, attn


# ---------------- pure-JAX reference (for correctness check) ----------------
def ref_forward(src, P):
    x = jnp.transpose(src, (1, 0, 2)).astype(jnp.float32)        # (B, S, D)
    B, S, D = x.shape
    qkv = x @ P["wqkv"] + P["bqkv"]
    q, k, v = qkv[..., :D], qkv[..., D:2 * D], qkv[..., 2 * D:]
    split = lambda t: t.reshape(B, S, NHEAD, HEAD_DIM).transpose(0, 2, 1, 3)
    qh, kh, vh = split(q) * (1.0 / math.sqrt(HEAD_DIM)), split(k), split(v)
    p = jax.nn.softmax(jnp.einsum("bhqd,bhkd->bhqk", qh, kh), axis=-1)
    ctx = jnp.einsum("bhqk,bhkd->bhqd", p, vh).transpose(0, 2, 1, 3).reshape(B, S, D)
    wo, w2 = P["wo_w2"][:D], P["wo_w2"][D:]
    bo, b2, g1, beta1, g2, beta2 = (P["vecs"][i] for i in range(6))
    attn_out = ctx @ wo + bo
    h1n = _ln(x + attn_out, g1, beta1)
    ff = jnp.maximum(h1n @ P["w1"] + P["b1"], 0.0) @ w2 + b2
    out = _ln(h1n + ff, g2, beta2)
    return jnp.transpose(out, (1, 0, 2)), jnp.mean(p, axis=1)


if __name__ == "__main__":
    key = jax.random.PRNGKey(0)
    keys = jax.random.split(key, 10)
    S, B = 8, 2

    def init(k, shape, scale=0.1):
        return (jax.random.normal(k, shape) * scale).astype(jnp.float32)

    # PyTorch-shaped parameters (weight is (out, in)), deterministic synthetic init
    in_proj_w = init(keys[0], (3 * D_MODEL, D_MODEL))
    in_proj_b = init(keys[1], (3 * D_MODEL,))
    out_proj_w = init(keys[2], (D_MODEL, D_MODEL))
    out_proj_b = init(keys[3], (D_MODEL,))
    lin1_w = init(keys[4], (DFF, D_MODEL))
    lin1_b = init(keys[5], (DFF,))
    lin2_w = init(keys[6], (D_MODEL, DFF))
    lin2_b = init(keys[7], (D_MODEL,))
    g1 = 1.0 + init(keys[8], (D_MODEL,), 0.05)
    beta1 = init(keys[9], (D_MODEL,), 0.05)
    g2 = jnp.ones((D_MODEL,), jnp.float32)
    beta2 = jnp.zeros((D_MODEL,), jnp.float32)

    # packed kernel parameters (weights pre-transposed to (in, out); small vectors stacked)
    P = dict(
        wqkv=in_proj_w.T,                                        # (D, 3D), columns ordered q|k|v
        bqkv=in_proj_b.reshape(1, -1),                           # (1, 3D)
        wo_w2=jnp.concatenate([out_proj_w.T, lin2_w.T], axis=0), # (D+DFF, D)
        w1=lin1_w.T,                                             # (D, DFF)
        b1=lin1_b.reshape(1, -1),                                # (1, DFF)
        vecs=jnp.stack([out_proj_b, lin2_b, g1, beta1, g2, beta2], axis=0),  # (6, D)
    )

    src = jax.random.normal(jax.random.PRNGKey(42), (S, B, D_MODEL), jnp.float32)

    out, attn = transformer_encoder_layer(src, P)
    jax.block_until_ready((out, attn))

    ref_out, ref_attn = ref_forward(src, P)
    assert out.shape == (S, B, D_MODEL) and attn.shape == (B, S, S)
    assert jnp.allclose(out, ref_out, atol=1e-4, rtol=1e-4), \
        float(jnp.max(jnp.abs(out - ref_out)))
    assert jnp.allclose(attn, ref_attn, atol=1e-5, rtol=1e-4), \
        float(jnp.max(jnp.abs(attn - ref_attn)))
    print("KERNEL_OK")
</pallas_src>

<mosaic_0001>
module attributes {stable_mosaic.version = 11 : i64} {
  func.func @encoder_layer_kernel(%arg0: memref<16x32xf32, #tpu.memory_space<vmem>>, %arg1: memref<32x96xf32, #tpu.memory_space<vmem>>, %arg2: memref<1x96xf32, #tpu.memory_space<vmem>>, %arg3: memref<96x32xf32, #tpu.memory_space<vmem>>, %arg4: memref<32x64xf32, #tpu.memory_space<vmem>>, %arg5: memref<1x64xf32, #tpu.memory_space<vmem>>, %arg6: memref<6x32xf32, #tpu.memory_space<vmem>>, %arg7: memref<16x32xf32, #tpu.memory_space<vmem>>, %arg8: memref<2x8x8xf32, #tpu.memory_space<vmem>>) attributes {dimension_semantics = [], scalar_prefetch = 0 : i64, scratch_operands = 0 : i64, tpu.core_type = #tpu.core_type<tc>} {
    %c0 = arith.constant 0 : index
    %c0_0 = arith.constant 0 : index
    %0 = vector.load %arg0[%c0, %c0_0] : memref<16x32xf32, #tpu.memory_space<vmem>>, vector<16x32xf32>
    %c0_1 = arith.constant 0 : index
    %c0_2 = arith.constant 0 : index
    %1 = vector.load %arg1[%c0_1, %c0_2] : memref<32x96xf32, #tpu.memory_space<vmem>>, vector<32x96xf32>
    %cst = arith.constant dense<0.000000e+00> : vector<16x96xf32>
    %2 = tpu.matmul %0, %1, %cst {dimension_numbers = #tpu.dot_dimension_numbers<[1], [0], [0], [1], [0, 0, 1, 1], [], []>} : vector<16x32xf32>, vector<32x96xf32>, vector<16x96xf32> -> vector<16x96xf32>
    %c0_3 = arith.constant 0 : index
    %c0_4 = arith.constant 0 : index
    %3 = vector.load %arg2[%c0_3, %c0_4] : memref<1x96xf32, #tpu.memory_space<vmem>>, vector<1x96xf32>
    %4 = vector.broadcast %3 : vector<1x96xf32> to vector<16x96xf32>
    %5 = arith.addf %2, %4 : vector<16x96xf32>
    %6 = vector.extract_strided_slice %5 {offsets = [0, 0], sizes = [16, 32], strides = [1, 1]} : vector<16x96xf32> to vector<16x32xf32>
    %cst_5 = arith.constant 0.353553385 : f32
    %7 = vector.broadcast %cst_5 : f32 to vector<16x32xf32>
    %8 = arith.mulf %6, %7 : vector<16x32xf32>
    %9 = vector.shape_cast %8 : vector<16x32xf32> to vector<2x8x32xf32>
    %10 = vector.extract_strided_slice %5 {offsets = [0, 32], sizes = [16, 32], strides = [1, 1]} : vector<16x96xf32> to vector<16x32xf32>
    %11 = vector.shape_cast %10 : vector<16x32xf32> to vector<2x8x32xf32>
    %12 = vector.extract_strided_slice %5 {offsets = [0, 64], sizes = [16, 32], strides = [1, 1]} : vector<16x96xf32> to vector<16x32xf32>
    %13 = vector.shape_cast %12 : vector<16x32xf32> to vector<2x8x32xf32>
    %14 = vector.extract_strided_slice %9 {offsets = [0, 0, 0], sizes = [2, 8, 8], strides = [1, 1, 1]} : vector<2x8x32xf32> to vector<2x8x8xf32>
    %15 = vector.extract_strided_slice %9 {offsets = [0, 0, 8], sizes = [2, 8, 8], strides = [1, 1, 1]} : vector<2x8x32xf32> to vector<2x8x8xf32>
    %16 = vector.extract_strided_slice %9 {offsets = [0, 0, 16], sizes = [2, 8, 8], strides = [1, 1, 1]} : vector<2x8x32xf32> to vector<2x8x8xf32>
    %17 = vector.extract_strided_slice %9 {offsets = [0, 0, 24], sizes = [2, 8, 8], strides = [1, 1, 1]} : vector<2x8x32xf32> to vector<2x8x8xf32>
    %18 = tpu.concatenate %14, %15, %16, %17 in 0 : vector<2x8x8xf32>, vector<2x8x8xf32>, vector<2x8x8xf32>, vector<2x8x8xf32> -> vector<8x8x8xf32>
    %19 = vector.extract_strided_slice %11 {offsets = [0, 0, 0], sizes = [2, 8, 8], strides = [1, 1, 1]} : vector<2x8x32xf32> to vector<2x8x8xf32>
    %20 = vector.extract_strided_slice %11 {offsets = [0, 0, 8], sizes = [2, 8, 8], strides = [1, 1, 1]} : vector<2x8x32xf32> to vector<2x8x8xf32>
    %21 = vector.extract_strided_slice %11 {offsets = [0, 0, 16], sizes = [2, 8, 8], strides = [1, 1, 1]} : vector<2x8x32xf32> to vector<2x8x8xf32>
    %22 = vector.extract_strided_slice %11 {offsets = [0, 0, 24], sizes = [2, 8, 8], strides = [1, 1, 1]} : vector<2x8x32xf32> to vector<2x8x8xf32>
    %23 = tpu.concatenate %19, %20, %21, %22 in 0 : vector<2x8x8xf32>, vector<2x8x8xf32>, vector<2x8x8xf32>, vector<2x8x8xf32> -> vector<8x8x8xf32>
    %24 = vector.extract_strided_slice %13 {offsets = [0, 0, 0], sizes = [2, 8, 8], strides = [1, 1, 1]} : vector<2x8x32xf32> to vector<2x8x8xf32>
    %25 = vector.extract_strided_slice %13 {offsets = [0, 0, 8], sizes = [2, 8, 8], strides = [1, 1, 1]} : vector<2x8x32xf32> to vector<2x8x8xf32>
    %26 = vector.extract_strided_slice %13 {offsets = [0, 0, 16], sizes = [2, 8, 8], strides = [1, 1, 1]} : vector<2x8x32xf32> to vector<2x8x8xf32>
    %27 = vector.extract_strided_slice %13 {offsets = [0, 0, 24], sizes = [2, 8, 8], strides = [1, 1, 1]} : vector<2x8x32xf32> to vector<2x8x8xf32>
    %28 = tpu.concatenate %24, %25, %26, %27 in 0 : vector<2x8x8xf32>, vector<2x8x8xf32>, vector<2x8x8xf32>, vector<2x8x8xf32> -> vector<8x8x8xf32>
    %cst_6 = arith.constant dense<0.000000e+00> : vector<8x8x8xf32>
    %29 = tpu.matmul %18, %23, %cst_6 {dimension_numbers = #tpu.dot_dimension_numbers<[2], [2], [1], [1], [0, 0, 0, 1, 1, 1], [0], [0]>} : vector<8x8x8xf32>, vector<8x8x8xf32>, vector<8x8x8xf32> -> vector<8x8x8xf32>
    %cst_7 = arith.constant dense<0xFF800000> : vector<8x8xf32>
    %30 = vector.multi_reduction <maximumf>, %29, %cst_7 [2] : vector<8x8x8xf32> to vector<8x8xf32>
    %31 = vector.shape_cast %30 : vector<8x8xf32> to vector<8x8x1xf32>
    %32 = vector.broadcast %31 : vector<8x8x1xf32> to vector<8x8x8xf32>
    %33 = arith.subf %29, %32 : vector<8x8x8xf32>
    %34 = math.exp %33 : vector<8x8x8xf32>
    %cst_8 = arith.constant dense<0.000000e+00> : vector<8x8xf32>
    %35 = vector.multi_reduction <add>, %34, %cst_8 [2] : vector<8x8x8xf32> to vector<8x8xf32>
    %36 = vector.shape_cast %35 : vector<8x8xf32> to vector<8x8x1xf32>
    %37 = tpu.reciprocal %36 : vector<8x8x1xf32> -> vector<8x8x1xf32>
    %38 = vector.broadcast %37 : vector<8x8x1xf32> to vector<8x8x8xf32>
    %39 = arith.mulf %34, %38 : vector<8x8x8xf32>
    %40 = vector.extract_strided_slice %39 {offsets = [0, 0, 0], sizes = [2, 8, 8], strides = [1, 1, 1]} : vector<8x8x8xf32> to vector<2x8x8xf32>
    %41 = vector.extract_strided_slice %39 {offsets = [2, 0, 0], sizes = [2, 8, 8], strides = [1, 1, 1]} : vector<8x8x8xf32> to vector<2x8x8xf32>
    %42 = arith.addf %40, %41 : vector<2x8x8xf32>
    %43 = vector.extract_strided_slice %39 {offsets = [4, 0, 0], sizes = [2, 8, 8], strides = [1, 1, 1]} : vector<8x8x8xf32> to vector<2x8x8xf32>
    %44 = arith.addf %42, %43 : vector<2x8x8xf32>
    %45 = vector.extract_strided_slice %39 {offsets = [6, 0, 0], sizes = [2, 8, 8], strides = [1, 1, 1]} : vector<8x8x8xf32> to vector<2x8x8xf32>
    %46 = arith.addf %44, %45 : vector<2x8x8xf32>
    %cst_9 = arith.constant 2.500000e-01 : f32
    %47 = vector.broadcast %cst_9 : f32 to vector<2x8x8xf32>
    %48 = arith.mulf %46, %47 : vector<2x8x8xf32>
    %c0_10 = arith.constant 0 : index
    %c0_11 = arith.constant 0 : index
    %c0_12 = arith.constant 0 : index
    %49 = vector.load %arg8[%c0_10, %c0_11, %c0_12] : memref<2x8x8xf32, #tpu.memory_space<vmem>>, vector<2x8x8xf32>
    tpu.vector_store %arg8[%c0_10, %c0_11, %c0_12], %48 {strides = array<i32>} : memref<2x8x8xf32, #tpu.memory_space<vmem>>, vector<2x8x8xf32>,
    %cst_13 = arith.constant dense<0.000000e+00> : vector<8x8x8xf32>
    %50 = tpu.matmul %39, %28, %cst_13 {dimension_numbers = #tpu.dot_dimension_numbers<[2], [1], [1], [2], [0, 0, 0, 1, 1, 2], [0], [0]>} : vector<8x8x8xf32>, vector<8x8x8xf32>, vector<8x8x8xf32> -> vector<8x8x8xf32>
    %51 = vector.extract_strided_slice %50 {offsets = [0, 0, 0], sizes = [2, 8, 8], strides = [1, 1, 1]} : vector<8x8x8xf32> to vector<2x8x8xf32>
    %52 = vector.extract_strided_slice %50 {offsets = [2, 0, 0], sizes = [2, 8, 8], strides = [1, 1, 1]} : vector<8x8x8xf32> to vector<2x8x8xf32>
    %53 = vector.extract_strided_slice %50 {offsets = [4, 0, 0], sizes = [2, 8, 8], strides = [1, 1, 1]} : vector<8x8x8xf32> to vector<2x8x8xf32>
    %54 = vector.extract_strided_slice %50 {offsets = [6, 0, 0], sizes = [2, 8, 8], strides = [1, 1, 1]} : vector<8x8x8xf32> to vector<2x8x8xf32>
    %55 = tpu.concatenate %51, %52, %53, %54 in 2 : vector<2x8x8xf32>, vector<2x8x8xf32>, vector<2x8x8xf32>, vector<2x8x8xf32> -> vector<2x8x32xf32>
    %56 = vector.shape_cast %55 : vector<2x8x32xf32> to vector<16x32xf32>
    %c0_14 = arith.constant 0 : index
    %c0_15 = arith.constant 0 : index
    %57 = vector.load %arg3[%c0_14, %c0_15] : memref<96x32xf32, #tpu.memory_space<vmem>>, vector<32x32xf32>
    %c32 = arith.constant 32 : index
    %c0_16 = arith.constant 0 : index
    %58 = vector.load %arg3[%c32, %c0_16] : memref<96x32xf32, #tpu.memory_space<vmem>>, vector<64x32xf32>
    %c0_17 = arith.constant 0 : index
    %c0_18 = arith.constant 0 : index
    %59 = vector.load %arg6[%c0_17, %c0_18] : memref<6x32xf32, #tpu.memory_space<vmem>>, vector<6x32xf32>
    %cst_19 = arith.constant dense<0.000000e+00> : vector<16x32xf32>
    %60 = tpu.matmul %56, %57, %cst_19 {dimension_numbers = #tpu.dot_dimension_numbers<[1], [0], [0], [1], [0, 0, 1, 1], [], []>} : vector<16x32xf32>, vector<32x32xf32>, vector<16x32xf32> -> vector<16x32xf32>
    %61 = vector.extract_strided_slice %59 {offsets = [0, 0], sizes = [1, 32], strides = [1, 1]} : vector<6x32xf32> to vector<1x32xf32>
    %62 = vector.broadcast %61 : vector<1x32xf32> to vector<16x32xf32>
    %63 = arith.addf %60, %62 : vector<16x32xf32>
    %64 = arith.addf %0, %63 : vector<16x32xf32>
    %65 = vector.extract_strided_slice %59 {offsets = [2, 0], sizes = [1, 32], strides = [1, 1]} : vector<6x32xf32> to vector<1x32xf32>
    %66 = vector.extract_strided_slice %59 {offsets = [3, 0], sizes = [1, 32], strides = [1, 1]} : vector<6x32xf32> to vector<1x32xf32>
    %cst_20 = arith.constant dense<0.000000e+00> : vector<16xf32>
    %67 = vector.multi_reduction <add>, %64, %cst_20 [1] : vector<16x32xf32> to vector<16xf32>
    %68 = vector.shape_cast %67 : vector<16xf32> to vector<16x1xf32>
    %cst_21 = arith.constant 3.200000e+01 : f32
    %69 = vector.broadcast %cst_21 : f32 to vector<16x1xf32>
    %70 = arith.divf %68, %69 : vector<16x1xf32>
    %71 = vector.broadcast %70 : vector<16x1xf32> to vector<16x32xf32>
    %72 = arith.subf %64, %71 : vector<16x32xf32>
    %73 = arith.mulf %72, %72 : vector<16x32xf32>
    %cst_22 = arith.constant dense<0.000000e+00> : vector<16xf32>
    %74 = vector.multi_reduction <add>, %73, %cst_22 [1] : vector<16x32xf32> to vector<16xf32>
    %75 = vector.shape_cast %74 : vector<16xf32> to vector<16x1xf32>
    %cst_23 = arith.constant 3.200000e+01 : f32
    %76 = vector.broadcast %cst_23 : f32 to vector<16x1xf32>
    %77 = arith.divf %75, %76 : vector<16x1xf32>
    %78 = vector.broadcast %70 : vector<16x1xf32> to vector<16x32xf32>
    %79 = arith.subf %64, %78 : vector<16x32xf32>
    %cst_24 = arith.constant 9.99999974E-6 : f32
    %80 = vector.broadcast %cst_24 : f32 to vector<16x1xf32>
    %81 = arith.addf %77, %80 : vector<16x1xf32>
    %82 = math.rsqrt %81 : vector<16x1xf32>
    %83 = vector.broadcast %82 : vector<16x1xf32> to vector<16x32xf32>
    %84 = arith.mulf %79, %83 : vector<16x32xf32>
    %85 = vector.broadcast %65 : vector<1x32xf32> to vector<16x32xf32>
    %86 = arith.mulf %84, %85 : vector<16x32xf32>
    %87 = vector.broadcast %66 : vector<1x32xf32> to vector<16x32xf32>
    %88 = arith.addf %86, %87 : vector<16x32xf32>
    %c0_25 = arith.constant 0 : index
    %c0_26 = arith.constant 0 : index
    %89 = vector.load %arg4[%c0_25, %c0_26] : memref<32x64xf32, #tpu.memory_space<vmem>>, vector<32x64xf32>
    %cst_27 = arith.constant dense<0.000000e+00> : vector<16x64xf32>
    %90 = tpu.matmul %88, %89, %cst_27 {dimension_numbers = #tpu.dot_dimension_numbers<[1], [0], [0], [1], [0, 0, 1, 1], [], []>} : vector<16x32xf32>, vector<32x64xf32>, vector<16x64xf32> -> vector<16x64xf32>
    %c0_28 = arith.constant 0 : index
    %c0_29 = arith.constant 0 : index
    %91 = vector.load %arg5[%c0_28, %c0_29] : memref<1x64xf32, #tpu.memory_space<vmem>>, vector<1x64xf32>
    %92 = vector.broadcast %91 : vector<1x64xf32> to vector<16x64xf32>
    %93 = arith.addf %90, %92 : vector<16x64xf32>
    %cst_30 = arith.constant 0.000000e+00 : f32
    %94 = vector.broadcast %cst_30 : f32 to vector<16x64xf32>
    %95 = arith.maximumf %93, %94 : vector<16x64xf32>
    %cst_31 = arith.constant dense<0.000000e+00> : vector<16x32xf32>
    %96 = tpu.matmul %95, %58, %cst_31 {dimension_numbers = #tpu.dot_dimension_numbers<[1], [0], [0], [1], [0, 0, 1, 1], [], []>} : vector<16x64xf32>, vector<64x32xf32>, vector<16x32xf32> -> vector<16x32xf32>
    %97 = vector.extract_strided_slice %59 {offsets = [1, 0], sizes = [1, 32], strides = [1, 1]} : vector<6x32xf32> to vector<1x32xf32>
    %98 = vector.broadcast %97 : vector<1x32xf32> to vector<16x32xf32>
    %99 = arith.addf %96, %98 : vector<16x32xf32>
    %100 = arith.addf %88, %99 : vector<16x32xf32>
    %101 = vector.extract_strided_slice %59 {offsets = [4, 0], sizes = [1, 32], strides = [1, 1]} : vector<6x32xf32> to vector<1x32xf32>
    %102 = vector.extract_strided_slice %59 {offsets = [5, 0], sizes = [1, 32], strides = [1, 1]} : vector<6x32xf32> to vector<1x32xf32>
    %cst_32 = arith.constant dense<0.000000e+00> : vector<16xf32>
    %103 = vector.multi_reduction <add>, %100, %cst_32 [1] : vector<16x32xf32> to vector<16xf32>
    %104 = vector.shape_cast %103 : vector<16xf32> to vector<16x1xf32>
    %cst_33 = arith.constant 3.200000e+01 : f32
    %105 = vector.broadcast %cst_33 : f32 to vector<16x1xf32>
    %106 = arith.divf %104, %105 : vector<16x1xf32>
    %107 = vector.broadcast %106 : vector<16x1xf32> to vector<16x32xf32>
    %108 = arith.subf %100, %107 : vector<16x32xf32>
    %109 = arith.mulf %108, %108 : vector<16x32xf32>
    %cst_34 = arith.constant dense<0.000000e+00> : vector<16xf32>
    %110 = vector.multi_reduction <add>, %109, %cst_34 [1] : vector<16x32xf32> to vector<16xf32>
    %111 = vector.shape_cast %110 : vector<16xf32> to vector<16x1xf32>
    %cst_35 = arith.constant 3.200000e+01 : f32
    %112 = vector.broadcast %cst_35 : f32 to vector<16x1xf32>
    %113 = arith.divf %111, %112 : vector<16x1xf32>
    %114 = vector.broadcast %106 : vector<16x1xf32> to vector<16x32xf32>
    %115 = arith.subf %100, %114 : vector<16x32xf32>
    %cst_36 = arith.constant 9.99999974E-6 : f32
    %116 = vector.broadcast %cst_36 : f32 to vector<16x1xf32>
    %117 = arith.addf %113, %116 : vector<16x1xf32>
    %118 = math.rsqrt %117 : vector<16x1xf32>
    %119 = vector.broadcast %118 : vector<16x1xf32> to vector<16x32xf32>
    %120 = arith.mulf %115, %119 : vector<16x32xf32>
    %121 = vector.broadcast %101 : vector<1x32xf32> to vector<16x32xf32>
    %122 = arith.mulf %120, %121 : vector<16x32xf32>
    %123 = vector.broadcast %102 : vector<1x32xf32> to vector<16x32xf32>
    %124 = arith.addf %122, %123 : vector<16x32xf32>
    %c0_37 = arith.constant 0 : index
    %c0_38 = arith.constant 0 : index
    %125 = vector.load %arg7[%c0_37, %c0_38] : memref<16x32xf32, #tpu.memory_space<vmem>>, vector<16x32xf32>
    tpu.vector_store %arg7[%c0_37, %c0_38], %124 {strides = array<i32>} : memref<16x32xf32, #tpu.memory_space<vmem>>, vector<16x32xf32>,
    return
  }
}

</mosaic_0001>

<llo_original>
// kernel: tpu_custom_call.1
$region0: #{tpu_custom_call.1}
  #allocation0 [shape = 'u32[]', space=smem, size = 0x4, offset = 0x4, fixed_abs, tag = 'smem constant byte address 0x4 - core index']
  #allocation1 [shape = 'u32[144,128]{1,0:T(1,128)}', space=vmem, size = 0x12000, scoped, tag = 'internal scratch']
  %s0 = inlined_call_operand.vmem [shape: f32[16,32], index: 0, kind: input, shape index: {}]
  %s1 = inlined_call_operand.vmem [shape: f32[32,96], index: 1, kind: input, shape index: {}]
  %s2 = inlined_call_operand.vmem [shape: f32[1,96], index: 2, kind: input, shape index: {}]
  %s3 = inlined_call_operand.vmem [shape: f32[96,32], index: 3, kind: input, shape index: {}]
  %s4 = inlined_call_operand.vmem [shape: f32[32,64], index: 4, kind: input, shape index: {}]
  %s5 = inlined_call_operand.vmem [shape: f32[1,64], index: 5, kind: input, shape index: {}]
  %s6 = inlined_call_operand.vmem [shape: f32[6,32], index: 6, kind: input, shape index: {}]
  %s7 = inlined_call_operand.hbm [shape: f32[16,32], index: 7, kind: output, shape index: {0}]
  %s8 = inlined_call_operand.hbm [shape: f32[2,8,8], index: 8, kind: output, shape index: {1}]
  %9 = xla_tuple %s7, %s8
  %s10 = sld [smem:[#allocation0]]
  $region46: #{tpu_custom_call.1} parent=0
    _
  %s12 = ssub.s32 1, %s10
  %s13 = scalar_select 0, %s12, %s10
  $region1: #{tpu_custom_call.1} parent=0
    #allocation2 [shape = 'u8[8192]{0}', space=vmem, size = 0x2000, scoped, tag = 'output window, operand 0, single buffered']
    #allocation3 [shape = 's32[1]{0}', space=sflag, size = 0x4, scoped, tag = 'scoped memory for tpu_custom_call.1']
    #allocation4 [shape = 'u8[8192]{0}', space=vmem, size = 0x2000, scoped, tag = 'output window, operand 1, single buffered']
    #allocation5 [shape = 's32[1]{0}', space=sflag, size = 0x4, scoped, tag = 'scoped memory for tpu_custom_call.1']
    %14 = vsyncpa [#allocation3], 0
    %15 = vsyncpa [#allocation5], 0
    // Predicated region
    $region2: #{tpu_custom_call.1} parent=1 // pred_check
      _
    $region3: #{tpu_custom_call.1} parent=1 // pred_check_branch
      %17 = sbr.rel (0) target = $region5
    $region4: #{tpu_custom_call.1} parent=1 // pred_region
      _
    $region5: #{tpu_custom_call.1} parent=1 // pred_fallthru
      _
    // Predicated region
    $region6: #{tpu_custom_call.1} parent=1 // pred_check
      _
    $region7: #{tpu_custom_call.1} parent=1 // pred_check_branch
      %19 = sbr.rel (0) target = $region9
    $region8: #{tpu_custom_call.1} parent=1 // pred_region
      _
    $region9: #{tpu_custom_call.1} parent=1 // pred_fallthru
      _
    // Predicated region
    $region10: #{tpu_custom_call.1} parent=1 // pred_check
      _
    $region11: #{tpu_custom_call.1} parent=1 // pred_check_branch
      %21 = sbr.rel (0) target = $region13
    $region12: #{tpu_custom_call.1} parent=1 // pred_region
      _
    $region13: #{tpu_custom_call.1} parent=1 // pred_fallthru
      _
    // Predicated region
    $region14: #{tpu_custom_call.1} parent=1 // pred_check
      _
    $region15: #{tpu_custom_call.1} parent=1 // pred_check_branch
      %23 = sbr.rel (0) target = $region17
    $region16: #{tpu_custom_call.1} parent=1 // pred_region
      _
    $region17: #{tpu_custom_call.1} parent=1 // pred_fallthru
      _
    // Predicated region
    $region18: #{tpu_custom_call.1} parent=1 // pred_check
      _
    $region19: #{tpu_custom_call.1} parent=1 // pred_check_branch
      %25 = sbr.rel (0) target = $region21
    $region20: #{tpu_custom_call.1} parent=1 // pred_region
      _
    $region21: #{tpu_custom_call.1} parent=1 // pred_fallthru
      _
    // Predicated region
    $region22: #{tpu_custom_call.1} parent=1 // pred_check
      _
    $region23: #{tpu_custom_call.1} parent=1 // pred_check_branch
      %27 = sbr.rel (0) target = $region25
    $region24: #{tpu_custom_call.1} parent=1 // pred_region
      _
    $region25: #{tpu_custom_call.1} parent=1 // pred_fallthru
      _
    // Predicated region
    $region26: #{tpu_custom_call.1} parent=1 // pred_check
      _
    $region27: #{tpu_custom_call.1} parent=1 // pred_check_branch
      %29 = sbr.rel (0) target = $region29
    $region28: #{tpu_custom_call.1} parent=1 // pred_region
      _
    $region29: #{tpu_custom_call.1} parent=1 // pred_fallthru
      _
    %v30 = vld [vmem:[%s0] sm:$0xff]
    %v31 = vld [vmem:[%s0 + $0x8] sm:$0xff]
    %v32 = vld [vmem:[%s1] sm:$0xff]
    %v33 = vld [vmem:[%s1 + $0x8] sm:$0xff]
    %v34 = vld [vmem:[%s1 + $0x10] sm:$0xff]
    %v35 = vld [vmem:[%s1 + $0x18] sm:$0xff]
    %v36 = vld [vmem:[%s2] sm:$0x1]
    %v38 = vlaneseq
    %v39 = vshrl.u32 %v38, 7
    %v40 = vsub.s32 0, %v39
    %v41 = vrot.slane %v36, %v40
    %vm43 = vcmask 261120
    %v45 = vsel %vm43, %v30, 0
    %v48 = vsel %vm43, %v31, 0
    %50 = vmatprep.subr.mxu0 0.0
    %51 = vmatpush1.msra.mxu0 %v32
    %52 = vmatprep.subr.mxu0 0.0
    %53 = vmatpush1.msra.mxu0 %v33
    %54 = vmatprep.subr.mxu0 0.0
    %55 = vmatpush1.msra.mxu0 %v34
    %56 = vmatprep.subr.mxu0 0.0
    %57 = vmatpush1.msra.mxu0 %v35
    %58 = vmatprep.subr.mxu0 0.0
    %59 = vmatpush1.msra.mxu0 0.0
    %60 = vmatprep.subr.mxu0 0.0
    %61 = vmatpush1.msra.mxu0 0.0
    %62 = vmatprep.subr.mxu0 0.0
    %63 = vmatpush1.msra.mxu0 0.0
    %64 = vmatprep.subr.mxu0 0.0
    %65 = vmatpush1.msra.mxu0 0.0
    %66 = vmatprep.subr.mxu0 0.0
    %67 = vmatpush1.msra.mxu0 0.0
    %68 = vmatprep.subr.mxu0 0.0
    %69 = vmatpush1.msra.mxu0 0.0
    %70 = vmatprep.subr.mxu0 0.0
    %71 = vmatpush1.msra.mxu0 0.0
    %72 = vmatprep.subr.mxu0 0.0
    %73 = vmatpush1.msra.mxu0 0.0
    %74 = vmatprep.subr.mxu0 0.0
    %75 = vmatpush1.msra.mxu0 0.0
    %76 = vmatprep.subr.mxu0 0.0
    %77 = vmatpush1.msra.mxu0 0.0
    %78 = vmatprep.subr.mxu0 0.0
    %79 = vmatpush1.msra.mxu0 0.0
    %80 = vmatprep.subr.mxu0 0.0
    %81 = vmatpush1.msra.mxu0 0.0
    %82 = vmatprep.subr.mxu0 0.0
    %83 = vmatpush1.msra.mxu0 0.0
    %84 = vmatprep.subr.mxu0 0.0
    %85 = vmatpush1.msra.mxu0 0.0
    %86 = vmatprep.subr.mxu0 0.0
    %87 = vmatpush1.msra.mxu0 0.0
    %88 = vmatprep.subr.mxu0 0.0
    %89 = vmatpush1.msra.mxu0 0.0
    %90 = vmatprep.subr.mxu0 0.0
    %91 = vmatpush1.msra.mxu0 0.0
    %92 = vmatprep.subr.mxu0 0.0
    %93 = vmatpush1.msra.mxu0 0.0
    %94 = vmatprep.subr.mxu0 0.0
    %95 = vmatpush1.msra.mxu0 0.0
    %96 = vmatprep.subr.mxu0 0.0
    %97 = vmatpush1.msra.mxu0 0.0
    %98 = vmatprep.subr.mxu0 0.0
    %99 = vmatpush1.msra.mxu0 0.0
    %100 = vmatprep.subr.mxu0 0.0
    %101 = vmatpush1.msra.mxu0 0.0
    %102 = vmatprep.subr.mxu0 0.0
    %103 = vmatpush1.msra.mxu0 0.0
    %104 = vmatprep.subr.mxu0 0.0
    %105 = vmatpush1.msra.mxu0 0.0
    %106 = vmatprep.subr.mxu0 0.0
    %107 = vmatpush1.msra.mxu0 0.0
    %108 = vmatprep.subr.mxu0 0.0
    %109 = vmatpush1.msra.mxu0 0.0
    %110 = vmatprep.subr.mxu0 0.0
    %111 = vmatpush1.msra.mxu0 0.0
    %112 = vmatprep.subr.mxu0 0.0
    %113 = vmatpush1.msra.mxu0 0.0
    %114 = vmatprep.mubr.f32.mxu0 0.0
    %115 = vmatmul.mubr.f32.gmra.mrb[0].mxu0 %v45
    %v116 = vpop.f32.mrb[0].mxu0
    %v117 = vadd.f32 %v41, %v116
    %v118 = vpop.f32.mrb[0].mxu0
    %119 = vmatprep.mubr.f32.mxu0 0.0
    %120 = vmatmul.mubr.f32.gmra.mrb[0].mxu0 %v48
    %v121 = vpop.f32.mrb[0].mxu0
    %v122 = vadd.f32 %v41, %v121
    %v123 = vpop.f32.mrb[0].mxu0
    %124 = vdwg.mxu0
    %v125 = vmul.f32 %v117, 0.35355338
    %v126 = vmul.f32 %v122, 0.35355338
    %129 = vrot.lane.b32.xlu0 %v125, 120
    %v130 = vpop.permute.xlu0 %129
    %131 = vrot.lane.b32.xlu0 %v126, 120
    %v132 = vpop.permute.xlu0 %131
    %133 = vrot.lane.b32.xlu0 %v125, 112
    %v134 = vpop.permute.xlu0 %133
    %135 = vrot.lane.b32.xlu0 %v126, 112
    %v136 = vpop.permute.xlu0 %135
    %137 = vrot.lane.b32.xlu0 %v125, 104
    %v138 = vpop.permute.xlu0 %137
    %139 = vrot.lane.b32.xlu0 %v126, 104
    %v140 = vpop.permute.xlu0 %139
    %143 = vrot.lane.b32.xlu0 %v117, 120
    %v144 = vpop.permute.xlu0 %143
    %145 = vrot.lane.b32.xlu0 %v122, 120
    %v146 = vpop.permute.xlu0 %145
    %147 = vrot.lane.b32.xlu0 %v117, 112
    %v148 = vpop.permute.xlu0 %147
    %149 = vrot.lane.b32.xlu0 %v122, 112
    %v150 = vpop.permute.xlu0 %149
    %151 = vrot.lane.b32.xlu0 %v117, 104
    %v152 = vpop.permute.xlu0 %151
    %153 = vrot.lane.b32.xlu0 %v122, 104
    %v154 = vpop.permute.xlu0 %153
    %155 = vrot.lane.b32.xlu0 %v117, 96
    %v156 = vpop.permute.xlu0 %155
    %vm157 = vcmask 64512
    %v158 = vsel %vm157, %v125, 0
    %v160 = vsel %vm157, %v156, 0
    %162 = vmatprep.subr.mxu0 0.0
    %163 = vmatpush1.xpose.msra.mxu0 %v160
    %164 = vmatprep.subr.mxu0 0.0
    %165 = vmatpush1.xpose.msra.mxu0 0.0
    %166 = vmatprep.subr.mxu0 0.0
    %167 = vmatpush1.xpose.msra.mxu0 0.0
    %168 = vmatprep.subr.mxu0 0.0
    %169 = vmatpush1.xpose.msra.mxu0 0.0
    %170 = vmatprep.subr.mxu0 0.0
    %171 = vmatpush1.xpose.msra.mxu0 0.0
    %172 = vmatprep.subr.mxu0 0.0
    %173 = vmatpush1.xpose.msra.mxu0 0.0
    %174 = vmatprep.subr.mxu0 0.0
    %175 = vmatpush1.xpose.msra.mxu0 0.0
    %176 = vmatprep.subr.mxu0 0.0
    %177 = vmatpush1.xpose.msra.mxu0 0.0
    %178 = vmatprep.subr.mxu0 0.0
    %179 = vmatpush1.xpose.msra.mxu0 0.0
    %180 = vmatprep.subr.mxu0 0.0
    %181 = vmatpush1.xpose.msra.mxu0 0.0
    %182 = vmatprep.subr.mxu0 0.0
    %183 = vmatpush1.xpose.msra.mxu0 0.0
    %184 = vmatprep.subr.mxu0 0.0
    %185 = vmatpush1.xpose.msra.mxu0 0.0
    %186 = vmatprep.subr.mxu0 0.0
    %187 = vmatpush1.xpose.msra.mxu0 0.0
    %188 = vmatprep.subr.mxu0 0.0
    %189 = vmatpush1.xpose.msra.mxu0 0.0
    %190 = vmatprep.subr.mxu0 0.0
    %191 = vmatpush1.xpose.msra.mxu0 0.0
    %192 = vmatprep.subr.mxu0 0.0
    %193 = vmatpush1.xpose.msra.mxu0 0.0
    %194 = vmatprep.subr.mxu0 0.0
    %195 = vmatpush1.xpose.msra.mxu0 0.0
    %196 = vmatprep.subr.mxu0 0.0
    %197 = vmatpush1.xpose.msra.mxu0 0.0
    %198 = vmatprep.subr.mxu0 0.0
    %199 = vmatpush1.xpose.msra.mxu0 0.0
    %200 = vmatprep.subr.mxu0 0.0
    %201 = vmatpush1.xpose.msra.mxu0 0.0
    %202 = vmatprep.subr.mxu0 0.0
    %203 = vmatpush1.xpose.msra.mxu0 0.0
    %204 = vmatprep.subr.mxu0 0.0
    %205 = vmatpush1.xpose.msra.mxu0 0.0
    %206 = vmatprep.subr.mxu0 0.0
    %207 = vmatpush1.xpose.msra.mxu0 0.0
    %208 = vmatprep.subr.mxu0 0.0
    %209 = vmatpush1.xpose.msra.mxu0 0.0
    %210 = vmatprep.subr.mxu0 0.0
    %211 = vmatpush1.xpose.msra.mxu0 0.0
    %212 = vmatprep.subr.mxu0 0.0
    %213 = vmatpush1.xpose.msra.mxu0 0.0
    %214 = vmatprep.subr.mxu0 0.0
    %215 = vmatpush1.xpose.msra.mxu0 0.0
    %216 = vmatprep.subr.mxu0 0.0
    %217 = vmatpush1.xpose.msra.mxu0 0.0
    %218 = vmatprep.subr.mxu0 0.0
    %219 = vmatpush1.xpose.msra.mxu0 0.0
    %220 = vmatprep.subr.mxu0 0.0
    %221 = vmatpush1.xpose.msra.mxu0 0.0
    %222 = vmatprep.subr.mxu0 0.0
    %223 = vmatpush1.xpose.msra.mxu0 0.0
    %224 = vmatprep.subr.mxu0 0.0
    %225 = vmatpush1.xpose.msra.mxu0 0.0
    %226 = vmatprep.mubr.f32.mxu0 0.0
    %227 = vmatmul.mubr.f32.gmra.mrb[0].mxu0 %v158
    %v228 = vpop.f32.mrb[0].mxu0
    %v229 = vadd.f32 0.0, %v228
    %v230 = vpop.f32.mrb[0].mxu0
    %231 = vdwg.mxu0
    %232 = vrot.lane.b32.xlu0 %v122, 96
    %v233 = vpop.permute.xlu0 %232
    %v234 = vsel %vm157, %v126, 0
    %v236 = vsel %vm157, %v233, 0
    %238 = vmatprep.subr.mxu0 0.0
    %239 = vmatpush1.xpose.msra.mxu0 %v236
    %240 = vmatprep.subr.mxu0 0.0
    %241 = vmatpush1.xpose.msra.mxu0 0.0
    %242 = vmatprep.subr.mxu0 0.0
    %243 = vmatpush1.xpose.msra.mxu0 0.0
    %244 = vmatprep.subr.mxu0 0.0
    %245 = vmatpush1.xpose.msra.mxu0 0.0
    %246 = vmatprep.subr.mxu0 0.0
    %247 = vmatpush1.xpose.msra.mxu0 0.0
    %248 = vmatprep.subr.mxu0 0.0
    %249 = vmatpush1.xpose.msra.mxu0 0.0
    %250 = vmatprep.subr.mxu0 0.0
    %251 = vmatpush1.xpose.msra.mxu0 0.0
    %252 = vmatprep.subr.mxu0 0.0
    %253 = vmatpush1.xpose.msra.mxu0 0.0
    %254 = vmatprep.subr.mxu0 0.0
    %255 = vmatpush1.xpose.msra.mxu0 0.0
    %256 = vmatprep.subr.mxu0 0.0
    %257 = vmatpush1.xpose.msra.mxu0 0.0
    %258 = vmatprep.subr.mxu0 0.0
    %259 = vmatpush1.xpose.msra.mxu0 0.0
    %260 = vmatprep.subr.mxu0 0.0
    %261 = vmatpush1.xpose.msra.mxu0 0.0
    %262 = vmatprep.subr.mxu0 0.0
    %263 = vmatpush1.xpose.msra.mxu0 0.0
    %264 = vmatprep.subr.mxu0 0.0
    %265 = vmatpush1.xpose.msra.mxu0 0.0
    %266 = vmatprep.subr.mxu0 0.0
    %267 = vmatpush1.xpose.msra.mxu0 0.0
    %268 = vmatprep.subr.mxu0 0.0
    %269 = vmatpush1.xpose.msra.mxu0 0.0
    %270 = vmatprep.subr.mxu0 0.0
    %271 = vmatpush1.xpose.msra.mxu0 0.0
    %272 = vmatprep.subr.mxu0 0.0
    %273 = vmatpush1.xpose.msra.mxu0 0.0
    %274 = vmatprep.subr.mxu0 0.0
    %275 = vmatpush1.xpose.msra.mxu0 0.0
    %276 = vmatprep.subr.mxu0 0.0
    %277 = vmatpush1.xpose.msra.mxu0 0.0
    %278 = vmatprep.subr.mxu0 0.0
    %279 = vmatpush1.xpose.msra.mxu0 0.0
    %280 = vmatprep.subr.mxu0 0.0
    %281 = vmatpush1.xpose.msra.mxu0 0.0
    %282 = vmatprep.subr.mxu0 0.0
    %283 = vmatpush1.xpose.msra.mxu0 0.0
    %284 = vmatprep.subr.mxu0 0.0
    %285 = vmatpush1.xpose.msra.mxu0 0.0
    %286 = vmatprep.subr.mxu0 0.0
    %287 = vmatpush1.xpose.msra.mxu0 0.0
    %288 = vmatprep.subr.mxu0 0.0
    %289 = vmatpush1.xpose.msra.mxu0 0.0
    %290 = vmatprep.subr.mxu0 0.0
    %291 = vmatpush1.xpose.msra.mxu0 0.0
    %292 = vmatprep.subr.mxu0 0.0
    %293 = vmatpush1.xpose.msra.mxu0 0.0
    %294 = vmatprep.subr.mxu0 0.0
    %295 = vmatpush1.xpose.msra.mxu0 0.0
    %296 = vmatprep.subr.mxu0 0.0
    %297 = vmatpush1.xpose.msra.mxu0 0.0
    %298 = vmatprep.subr.mxu0 0.0
    %299 = vmatpush1.xpose.msra.mxu0 0.0
    %300 = vmatprep.subr.mxu0 0.0
    %301 = vmatpush1.xpose.msra.mxu0 0.0
    %302 = vmatprep.mubr.f32.mxu0 0.0
    %303 = vmatmul.mubr.f32.gmra.mrb[0].mxu0 %v234
    %v304 = vpop.f32.mrb[0].mxu0
    %v305 = vadd.f32 0.0, %v304
    %v306 = vpop.f32.mrb[0].mxu0
    %307 = vdwg.mxu0
    %308 = vrot.lane.b32.xlu0 %v144, 96
    %v309 = vpop.permute.xlu0 %308
    %v310 = vsel %vm157, %v130, 0
    %v312 = vsel %vm157, %v309, 0
    %314 = vmatprep.subr.mxu0 0.0
    %315 = vmatpush1.xpose.msra.mxu0 %v312
    %316 = vmatprep.subr.mxu0 0.0
    %317 = vmatpush1.xpose.msra.mxu0 0.0
    %318 = vmatprep.subr.mxu0 0.0
    %319 = vmatpush1.xpose.msra.mxu0 0.0
    %320 = vmatprep.subr.mxu0 0.0
    %321 = vmatpush1.xpose.msra.mxu0 0.0
    %322 = vmatprep.subr.mxu0 0.0
    %323 = vmatpush1.xpose.msra.mxu0 0.0
    %324 = vmatprep.subr.mxu0 0.0
    %325 = vmatpush1.xpose.msra.mxu0 0.0
    %326 = vmatprep.subr.mxu0 0.0
    %327 = vmatpush1.xpose.msra.mxu0 0.0
    %328 = vmatprep.subr.mxu0 0.0
    %329 = vmatpush1.xpose.msra.mxu0 0.0
    %330 = vmatprep.subr.mxu0 0.0
    %331 = vmatpush1.xpose.msra.mxu0 0.0
    %332 = vmatprep.subr.mxu0 0.0
    %333 = vmatpush1.xpose.msra.mxu0 0.0
    %334 = vmatprep.subr.mxu0 0.0
    %335 = vmatpush1.xpose.msra.mxu0 0.0
    %336 = vmatprep.subr.mxu0 0.0
    %337 = vmatpush1.xpose.msra.mxu0 0.0
    %338 = vmatprep.subr.mxu0 0.0
    %339 = vmatpush1.xpose.msra.mxu0 0.0
    %340 = vmatprep.subr.mxu0 0.0
    %341 = vmatpush1.xpose.msra.mxu0 0.0
    %342 = vmatprep.subr.mxu0 0.0
    %343 = vmatpush1.xpose.msra.mxu0 0.0
    %344 = vmatprep.subr.mxu0 0.0
    %345 = vmatpush1.xpose.msra.mxu0 0.0
    %346 = vmatprep.subr.mxu0 0.0
    %347 = vmatpush1.xpose.msra.mxu0 0.0
    %348 = vmatprep.subr.mxu0 0.0
    %349 = vmatpush1.xpose.msra.mxu0 0.0
    %350 = vmatprep.subr.mxu0 0.0
    %351 = vmatpush1.xpose.msra.mxu0 0.0
    %352 = vmatprep.subr.mxu0 0.0
    %353 = vmatpush1.xpose.msra.mxu0 0.0
    %354 = vmatprep.subr.mxu0 0.0
    %355 = vmatpush1.xpose.msra.mxu0 0.0
    %356 = vmatprep.subr.mxu0 0.0
    %357 = vmatpush1.xpose.msra.mxu0 0.0
    %358 = vmatprep.subr.mxu0 0.0
    %359 = vmatpush1.xpose.msra.mxu0 0.0
    %360 = vmatprep.subr.mxu0 0.0
    %361 = vmatpush1.xpose.msra.mxu0 0.0
    %362 = vmatprep.subr.mxu0 0.0
    %363 = vmatpush1.xpose.msra.mxu0 0.0
    %364 = vmatprep.subr.mxu0 0.0
    %365 = vmatpush1.xpose.msra.mxu0 0.0
    %366 = vmatprep.subr.mxu0 0.0
    %367 = vmatpush1.xpose.msra.mxu0 0.0
    %368 = vmatprep.subr.mxu0 0.0
    %369 = vmatpush1.xpose.msra.mxu0 0.0
    %370 = vmatprep.subr.mxu0 0.0
    %371 = vmatpush1.xpose.msra.mxu0 0.0
    %372 = vmatprep.subr.mxu0 0.0
    %373 = vmatpush1.xpose.msra.mxu0 0.0
    %374 = vmatprep.subr.mxu0 0.0
    %375 = vmatpush1.xpose.msra.mxu0 0.0
    %376 = vmatprep.subr.mxu0 0.0
    %377 = vmatpush1.xpose.msra.mxu0 0.0
    %378 = vmatprep.mubr.f32.mxu0 0.0
    %379 = vmatmul.mubr.f32.gmra.mrb[0].mxu0 %v310
    %v380 = vpop.f32.mrb[0].mxu0
    %v381 = vadd.f32 0.0, %v380
    %v382 = vpop.f32.mrb[0].mxu0
    %383 = vdwg.mxu0
    %384 = vrot.lane.b32.xlu0 %v146, 96
    %v385 = vpop.permute.xlu0 %384
    %v386 = vsel %vm157, %v132, 0
    %v388 = vsel %vm157, %v385, 0
    %390 = vmatprep.subr.mxu0 0.0
    %391 = vmatpush1.xpose.msra.mxu0 %v388
    %392 = vmatprep.subr.mxu0 0.0
    %393 = vmatpush1.xpose.msra.mxu0 0.0
    %394 = vmatprep.subr.mxu0 0.0
    %395 = vmatpush1.xpose.msra.mxu0 0.0
    %396 = vmatprep.subr.mxu0 0.0
    %397 = vmatpush1.xpose.msra.mxu0 0.0
    %398 = vmatprep.subr.mxu0 0.0
    %399 = vmatpush1.xpose.msra.mxu0 0.0
    %400 = vmatprep.subr.mxu0 0.0
    %401 = vmatpush1.xpose.msra.mxu0 0.0
    %402 = vmatprep.subr.mxu0 0.0
    %403 = vmatpush1.xpose.msra.mxu0 0.0
    %404 = vmatprep.subr.mxu0 0.0
    %405 = vmatpush1.xpose.msra.mxu0 0.0
    %406 = vmatprep.subr.mxu0 0.0
    %407 = vmatpush1.xpose.msra.mxu0 0.0
    %408 = vmatprep.subr.mxu0 0.0
    %409 = vmatpush1.xpose.msra.mxu0 0.0
    %410 = vmatprep.subr.mxu0 0.0
    %411 = vmatpush1.xpose.msra.mxu0 0.0
    %412 = vmatprep.subr.mxu0 0.0
    %413 = vmatpush1.xpose.msra.mxu0 0.0
    %414 = vmatprep.subr.mxu0 0.0
    %415 = vmatpush1.xpose.msra.mxu0 0.0
    %416 = vmatprep.subr.mxu0 0.0
    %417 = vmatpush1.xpose.msra.mxu0 0.0
    %418 = vmatprep.subr.mxu0 0.0
    %419 = vmatpush1.xpose.msra.mxu0 0.0
    %420 = vmatprep.subr.mxu0 0.0
    %421 = vmatpush1.xpose.msra.mxu0 0.0
    %422 = vmatprep.subr.mxu0 0.0
    %423 = vmatpush1.xpose.msra.mxu0 0.0
    %424 = vmatprep.subr.mxu0 0.0
    %425 = vmatpush1.xpose.msra.mxu0 0.0
    %426 = vmatprep.subr.mxu0 0.0
    %427 = vmatpush1.xpose.msra.mxu0 0.0
    %428 = vmatprep.subr.mxu0 0.0
    %429 = vmatpush1.xpose.msra.mxu0 0.0
    %430 = vmatprep.subr.mxu0 0.0
    %431 = vmatpush1.xpose.msra.mxu0 0.0
    %432 = vmatprep.subr.mxu0 0.0
    %433 = vmatpush1.xpose.msra.mxu0 0.0
    %434 = vmatprep.subr.mxu0 0.0
    %435 = vmatpush1.xpose.msra.mxu0 0.0
    %436 = vmatprep.subr.mxu0 0.0
    %437 = vmatpush1.xpose.msra.mxu0 0.0
    %438 = vmatprep.subr.mxu0 0.0
    %439 = vmatpush1.xpose.msra.mxu0 0.0
    %440 = vmatprep.subr.mxu0 0.0
    %441 = vmatpush1.xpose.msra.mxu0 0.0
    %442 = vmatprep.subr.mxu0 0.0
    %443 = vmatpush1.xpose.msra.mxu0 0.0
    %444 = vmatprep.subr.mxu0 0.0
    %445 = vmatpush1.xpose.msra.mxu0 0.0
    %446 = vmatprep.subr.mxu0 0.0
    %447 = vmatpush1.xpose.msra.mxu0 0.0
    %448 = vmatprep.subr.mxu0 0.0
    %449 = vmatpush1.xpose.msra.mxu0 0.0
    %450 = vmatprep.subr.mxu0 0.0
    %451 = vmatpush1.xpose.msra.mxu0 0.0
    %452 = vmatprep.subr.mxu0 0.0
    %453 = vmatpush1.xpose.msra.mxu0 0.0
    %454 = vmatprep.mubr.f32.mxu0 0.0
    %455 = vmatmul.mubr.f32.gmra.mrb[0].mxu0 %v386
    %v456 = vpop.f32.mrb[0].mxu0
    %v457 = vadd.f32 0.0, %v456
    %v458 = vpop.f32.mrb[0].mxu0
    %459 = vdwg.mxu0
    %460 = vrot.lane.b32.xlu0 %v148, 96
    %v461 = vpop.permute.xlu0 %460
    %v462 = vsel %vm157, %v134, 0
    %v464 = vsel %vm157, %v461, 0
    %466 = vmatprep.subr.mxu0 0.0
    %467 = vmatpush1.xpose.msra.mxu0 %v464
    %468 = vmatprep.subr.mxu0 0.0
    %469 = vmatpush1.xpose.msra.mxu0 0.0
    %470 = vmatprep.subr.mxu0 0.0
    %471 = vmatpush1.xpose.msra.mxu0 0.0
    %472 = vmatprep.subr.mxu0 0.0
    %473 = vmatpush1.xpose.msra.mxu0 0.0
    %474 = vmatprep.subr.mxu0 0.0
    %475 = vmatpush1.xpose.msra.mxu0 0.0
    %476 = vmatprep.subr.mxu0 0.0
    %477 = vmatpush1.xpose.msra.mxu0 0.0
    %478 = vmatprep.subr.mxu0 0.0
    %479 = vmatpush1.xpose.msra.mxu0 0.0
    %480 = vmatprep.subr.mxu0 0.0
    %481 = vmatpush1.xpose.msra.mxu0 0.0
    %482 = vmatprep.subr.mxu0 0.0
    %483 = vmatpush1.xpose.msra.mxu0 0.0
    %484 = vmatprep.subr.mxu0 0.0
    %485 = vmatpush1.xpose.msra.mxu0 0.0
    %486 = vmatprep.subr.mxu0 0.0
    %487 = vmatpush1.xpose.msra.mxu0 0.0
    %488 = vmatprep.subr.mxu0 0.0
    %489 = vmatpush1.xpose.msra.mxu0 0.0
    %490 = vmatprep.subr.mxu0 0.0
    %491 = vmatpush1.xpose.msra.mxu0 0.0
    %492 = vmatprep.subr.mxu0 0.0
    %493 = vmatpush1.xpose.msra.mxu0 0.0
    %494 = vmatprep.subr.mxu0 0.0
    %495 = vmatpush1.xpose.msra.mxu0 0.0
    %496 = vmatprep.subr.mxu0 0.0
    %497 = vmatpush1.xpose.msra.mxu0 0.0
    %498 = vmatprep.subr.mxu0 0.0
    %499 = vmatpush1.xpose.msra.mxu0 0.0
    %500 = vmatprep.subr.mxu0 0.0
    %501 = vmatpush1.xpose.msra.mxu0 0.0
    %502 = vmatprep.subr.mxu0 0.0
    %503 = vmatpush1.xpose.msra.mxu0 0.0
    %504 = vmatprep.subr.mxu0 0.0
    %505 = vmatpush1.xpose.msra.mxu0 0.0
    %506 = vmatprep.subr.mxu0 0.0
    %507 = vmatpush1.xpose.msra.mxu0 0.0
    %508 = vmatprep.subr.mxu0 0.0
    %509 = vmatpush1.xpose.msra.mxu0 0.0
    %510 = vmatprep.subr.mxu0 0.0
    %511 = vmatpush1.xpose.msra.mxu0 0.0
    %512 = vmatprep.subr.mxu0 0.0
    %513 = vmatpush1.xpose.msra.mxu0 0.0
    %514 = vmatprep.subr.mxu0 0.0
    %515 = vmatpush1.xpose.msra.mxu0 0.0
    %516 = vmatprep.subr.mxu0 0.0
    %517 = vmatpush1.xpose.msra.mxu0 0.0
    %518 = vmatprep.subr.mxu0 0.0
    %519 = vmatpush1.xpose.msra.mxu0 0.0
    %520 = vmatprep.subr.mxu0 0.0
    %521 = vmatpush1.xpose.msra.mxu0 0.0
    %522 = vmatprep.subr.mxu0 0.0
    %523 = vmatpush1.xpose.msra.mxu0 0.0
    %524 = vmatprep.subr.mxu0 0.0
    %525 = vmatpush1.xpose.msra.mxu0 0.0
    %526 = vmatprep.subr.mxu0 0.0
    %527 = vmatpush1.xpose.msra.mxu0 0.0
    %528 = vmatprep.subr.mxu0 0.0
    %529 = vmatpush1.xpose.msra.mxu0 0.0
    %530 = vmatprep.mubr.f32.mxu0 0.0
    %531 = vmatmul.mubr.f32.gmra.mrb[0].mxu0 %v462
    %v532 = vpop.f32.mrb[0].mxu0
    %v533 = vadd.f32 0.0, %v532
    %v534 = vpop.f32.mrb[0].mxu0
    %535 = vdwg.mxu0
    %536 = vrot.lane.b32.xlu0 %v150, 96
    %v537 = vpop.permute.xlu0 %536
    %v538 = vsel %vm157, %v136, 0
    %v540 = vsel %vm157, %v537, 0
    %542 = vmatprep.subr.mxu0 0.0
    %543 = vmatpush1.xpose.msra.mxu0 %v540
    %544 = vmatprep.subr.mxu0 0.0
    %545 = vmatpush1.xpose.msra.mxu0 0.0
    %546 = vmatprep.subr.mxu0 0.0
    %547 = vmatpush1.xpose.msra.mxu0 0.0
    %548 = vmatprep.subr.mxu0 0.0
    %549 = vmatpush1.xpose.msra.mxu0 0.0
    %550 = vmatprep.subr.mxu0 0.0
    %551 = vmatpush1.xpose.msra.mxu0 0.0
    %552 = vmatprep.subr.mxu0 0.0
    %553 = vmatpush1.xpose.msra.mxu0 0.0
    %554 = vmatprep.subr.mxu0 0.0
    %555 = vmatpush1.xpose.msra.mxu0 0.0
    %556 = vmatprep.subr.mxu0 0.0
    %557 = vmatpush1.xpose.msra.mxu0 0.0
    %558 = vmatprep.subr.mxu0 0.0
    %559 = vmatpush1.xpose.msra.mxu0 0.0
    %560 = vmatprep.subr.mxu0 0.0
    %561 = vmatpush1.xpose.msra.mxu0 0.0
    %562 = vmatprep.subr.mxu0 0.0
    %563 = vmatpush1.xpose.msra.mxu0 0.0
    %564 = vmatprep.subr.mxu0 0.0
    %565 = vmatpush1.xpose.msra.mxu0 0.0
    %566 = vmatprep.subr.mxu0 0.0
    %567 = vmatpush1.xpose.msra.mxu0 0.0
    %568 = vmatprep.subr.mxu0 0.0
    %569 = vmatpush1.xpose.msra.mxu0 0.0
    %570 = vmatprep.subr.mxu0 0.0
    %571 = vmatpush1.xpose.msra.mxu0 0.0
    %572 = vmatprep.subr.mxu0 0.0
    %573 = vmatpush1.xpose.msra.mxu0 0.0
    %574 = vmatprep.subr.mxu0 0.0
    %575 = vmatpush1.xpose.msra.mxu0 0.0
    %576 = vmatprep.subr.mxu0 0.0
    %577 = vmatpush1.xpose.msra.mxu0 0.0
    %578 = vmatprep.subr.mxu0 0.0
    %579 = vmatpush1.xpose.msra.mxu0 0.0
    %580 = vmatprep.subr.mxu0 0.0
    %581 = vmatpush1.xpose.msra.mxu0 0.0
    %582 = vmatprep.subr.mxu0 0.0
    %583 = vmatpush1.xpose.msra.mxu0 0.0
    %584 = vmatprep.subr.mxu0 0.0
    %585 = vmatpush1.xpose.msra.mxu0 0.0
    %586 = vmatprep.subr.mxu0 0.0
    %587 = vmatpush1.xpose.msra.mxu0 0.0
    %588 = vmatprep.subr.mxu0 0.0
    %589 = vmatpush1.xpose.msra.mxu0 0.0
    %590 = vmatprep.subr.mxu0 0.0
    %591 = vmatpush1.xpose.msra.mxu0 0.0
    %592 = vmatprep.subr.mxu0 0.0
    %593 = vmatpush1.xpose.msra.mxu0 0.0
    %594 = vmatprep.subr.mxu0 0.0
    %595 = vmatpush1.xpose.msra.mxu0 0.0
    %596 = vmatprep.subr.mxu0 0.0
    %597 = vmatpush1.xpose.msra.mxu0 0.0
    %598 = vmatprep.subr.mxu0 0.0
    %599 = vmatpush1.xpose.msra.mxu0 0.0
    %600 = vmatprep.subr.mxu0 0.0
    %601 = vmatpush1.xpose.msra.mxu0 0.0
    %602 = vmatprep.subr.mxu0 0.0
    %603 = vmatpush1.xpose.msra.mxu0 0.0
    %604 = vmatprep.subr.mxu0 0.0
    %605 = vmatpush1.xpose.msra.mxu0 0.0
    %606 = vmatprep.mubr.f32.mxu0 0.0
    %607 = vmatmul.mubr.f32.gmra.mrb[0].mxu0 %v538
    %v608 = vpop.f32.mrb[0].mxu0
    %v609 = vadd.f32 0.0, %v608
    %v610 = vpop.f32.mrb[0].mxu0
    %611 = vdwg.mxu0
    %612 = vrot.lane.b32.xlu0 %v152, 96
    %v613 = vpop.permute.xlu0 %612
    %v614 = vsel %vm157, %v138, 0
    %v616 = vsel %vm157, %v613, 0
    %618 = vmatprep.subr.mxu0 0.0
    %619 = vmatpush1.xpose.msra.mxu0 %v616
    %620 = vmatprep.subr.mxu0 0.0
    %621 = vmatpush1.xpose.msra.mxu0 0.0
    %622 = vmatprep.subr.mxu0 0.0
    %623 = vmatpush1.xpose.msra.mxu0 0.0
    %624 = vmatprep.subr.mxu0 0.0
    %625 = vmatpush1.xpose.msra.mxu0 0.0
    %626 = vmatprep.subr.mxu0 0.0
    %627 = vmatpush1.xpose.msra.mxu0 0.0
    %628 = vmatprep.subr.mxu0 0.0
    %629 = vmatpush1.xpose.msra.mxu0 0.0
    %630 = vmatprep.subr.mxu0 0.0
    %631 = vmatpush1.xpose.msra.mxu0 0.0
    %632 = vmatprep.subr.mxu0 0.0
    %633 = vmatpush1.xpose.msra.mxu0 0.0
    %634 = vmatprep.subr.mxu0 0.0
    %635 = vmatpush1.xpose.msra.mxu0 0.0
    %636 = vmatprep.subr.mxu0 0.0
    %637 = vmatpush1.xpose.msra.mxu0 0.0
    %638 = vmatprep.subr.mxu0 0.0
    %639 = vmatpush1.xpose.msra.mxu0 0.0
    %640 = vmatprep.subr.mxu0 0.0
    %641 = vmatpush1.xpose.msra.mxu0 0.0
    %642 = vmatprep.subr.mxu0 0.0
    %643 = vmatpush1.xpose.msra.mxu0 0.0
    %644 = vmatprep.subr.mxu0 0.0
    %645 = vmatpush1.xpose.msra.mxu0 0.0
    %646 = vmatprep.subr.mxu0 0.0
    %647 = vmatpush1.xpose.msra.mxu0 0.0
    %648 = vmatprep.subr.mxu0 0.0
    %649 = vmatpush1.xpose.msra.mxu0 0.0
    %650 = vmatprep.subr.mxu0 0.0
    %651 = vmatpush1.xpose.msra.mxu0 0.0
    %652 = vmatprep.subr.mxu0 0.0
    %653 = vmatpush1.xpose.msra.mxu0 0.0
    %654 = vmatprep.subr.mxu0 0.0
    %655 = vmatpush1.xpose.msra.mxu0 0.0
    %656 = vmatprep.subr.mxu0 0.0
    %657 = vmatpush1.xpose.msra.mxu0 0.0
    %658 = vmatprep.subr.mxu0 0.0
    %659 = vmatpush1.xpose.msra.mxu0 0.0
    %660 = vmatprep.subr.mxu0 0.0
    %661 = vmatpush1.xpose.msra.mxu0 0.0
    %662 = vmatprep.subr.mxu0 0.0
    %663 = vmatpush1.xpose.msra.mxu0 0.0
    %664 = vmatprep.subr.mxu0 0.0
    %665 = vmatpush1.xpose.msra.mxu0 0.0
    %666 = vmatprep.subr.mxu0 0.0
    %667 = vmatpush1.xpose.msra.mxu0 0.0
    %668 = vmatprep.subr.mxu0 0.0
    %669 = vmatpush1.xpose.msra.mxu0 0.0
    %670 = vmatprep.subr.mxu0 0.0
    %671 = vmatpush1.xpose.msra.mxu0 0.0
    %672 = vmatprep.subr.mxu0 0.0
    %673 = vmatpush1.xpose.msra.mxu0 0.0
    %674 = vmatprep.subr.mxu0 0.0
    %675 = vmatpush1.xpose.msra.mxu0 0.0
    %676 = vmatprep.subr.mxu0 0.0
    %677 = vmatpush1.xpose.msra.mxu0 0.0
    %678 = vmatprep.subr.mxu0 0.0
    %679 = vmatpush1.xpose.msra.mxu0 0.0
    %680 = vmatprep.subr.mxu0 0.0
    %681 = vmatpush1.xpose.msra.mxu0 0.0
    %682 = vmatprep.mubr.f32.mxu0 0.0
    %683 = vmatmul.mubr.f32.gmra.mrb[0].mxu0 %v614
    %v684 = vpop.f32.mrb[0].mxu0
    %v685 = vadd.f32 0.0, %v684
    %v686 = vpop.f32.mrb[0].mxu0
    %687 = vdwg.mxu0
    %688 = vrot.lane.b32.xlu0 %v154, 96
    %v689 = vpop.permute.xlu0 %688
    %v690 = vsel %vm157, %v140, 0
    %v692 = vsel %vm157, %v689, 0
    %694 = vmatprep.subr.mxu0 0.0
    %695 = vmatpush1.xpose.msra.mxu0 %v692
    %696 = vmatprep.subr.mxu0 0.0
    %697 = vmatpush1.xpose.msra.mxu0 0.0
    %698 = vmatprep.subr.mxu0 0.0
    %699 = vmatpush1.xpose.msra.mxu0 0.0
    %700 = vmatprep.subr.mxu0 0.0
    %701 = vmatpush1.xpose.msra.mxu0 0.0
    %702 = vmatprep.subr.mxu0 0.0
    %703 = vmatpush1.xpose.msra.mxu0 0.0
    %704 = vmatprep.subr.mxu0 0.0
    %705 = vmatpush1.xpose.msra.mxu0 0.0
    %706 = vmatprep.subr.mxu0 0.0
    %707 = vmatpush1.xpose.msra.mxu0 0.0
    %708 = vmatprep.subr.mxu0 0.0
    %709 = vmatpush1.xpose.msra.mxu0 0.0
    %710 = vmatprep.subr.mxu0 0.0
    %711 = vmatpush1.xpose.msra.mxu0 0.0
    %712 = vmatprep.subr.mxu0 0.0
    %713 = vmatpush1.xpose.msra.mxu0 0.0
    %714 = vmatprep.subr.mxu0 0.0
    %715 = vmatpush1.xpose.msra.mxu0 0.0
    %716 = vmatprep.subr.mxu0 0.0
    %717 = vmatpush1.xpose.msra.mxu0 0.0
    %718 = vmatprep.subr.mxu0 0.0
    %719 = vmatpush1.xpose.msra.mxu0 0.0
    %720 = vmatprep.subr.mxu0 0.0
    %721 = vmatpush1.xpose.msra.mxu0 0.0
    %722 = vmatprep.subr.mxu0 0.0
    %723 = vmatpush1.xpose.msra.mxu0 0.0
    %724 = vmatprep.subr.mxu0 0.0
    %725 = vmatpush1.xpose.msra.mxu0 0.0
    %726 = vmatprep.subr.mxu0 0.0
    %727 = vmatpush1.xpose.msra.mxu0 0.0
    %728 = vmatprep.subr.mxu0 0.0
    %729 = vmatpush1.xpose.msra.mxu0 0.0
    %730 = vmatprep.subr.mxu0 0.0
    %731 = vmatpush1.xpose.msra.mxu0 0.0
    %732 = vmatprep.subr.mxu0 0.0
    %733 = vmatpush1.xpose.msra.mxu0 0.0
    %734 = vmatprep.subr.mxu0 0.0
    %735 = vmatpush1.xpose.msra.mxu0 0.0
    %736 = vmatprep.subr.mxu0 0.0
    %737 = vmatpush1.xpose.msra.mxu0 0.0
    %738 = vmatprep.subr.mxu0 0.0
    %739 = vmatpush1.xpose.msra.mxu0 0.0
    %740 = vmatprep.subr.mxu0 0.0
    %741 = vmatpush1.xpose.msra.mxu0 0.0
    %742 = vmatprep.subr.mxu0 0.0
    %743 = vmatpush1.xpose.msra.mxu0 0.0
    %744 = vmatprep.subr.mxu0 0.0
    %745 = vmatpush1.xpose.msra.mxu0 0.0
    %746 = vmatprep.subr.mxu0 0.0
    %747 = vmatpush1.xpose.msra.mxu0 0.0
    %748 = vmatprep.subr.mxu0 0.0
    %749 = vmatpush1.xpose.msra.mxu0 0.0
    %750 = vmatprep.subr.mxu0 0.0
    %751 = vmatpush1.xpose.msra.mxu0 0.0
    %752 = vmatprep.subr.mxu0 0.0
    %753 = vmatpush1.xpose.msra.mxu0 0.0
    %754 = vmatprep.subr.mxu0 0.0
    %755 = vmatpush1.xpose.msra.mxu0 0.0
    %756 = vmatprep.subr.mxu0 0.0
    %757 = vmatpush1.xpose.msra.mxu0 0.0
    %758 = vmatprep.mubr.f32.mxu0 0.0
    %759 = vmatmul.mubr.f32.gmra.mrb[0].mxu0 %v690
    %v760 = vpop.f32.mrb[0].mxu0
    %v761 = vadd.f32 0.0, %v760
    %v762 = vpop.f32.mrb[0].mxu0
    %763 = vdwg.mxu0
    %v764 = vsel %vm157, %v229, -inf
    %765 = vmax.xlane.f32.xlu0 %v764
    %v766 = vpop.xlane.xlu0 %765
    %v767 = vsel %vm157, %v305, -inf
    %768 = vmax.xlane.f32.xlu0 %v767
    %v769 = vpop.xlane.xlu0 %768
    %v770 = vsel %vm157, %v381, -inf
    %771 = vmax.xlane.f32.xlu0 %v770
    %v772 = vpop.xlane.xlu0 %771
    %v773 = vsel %vm157, %v457, -inf
    %774 = vmax.xlane.f32.xlu0 %v773
    %v775 = vpop.xlane.xlu0 %774
    %v776 = vsel %vm157, %v533, -inf
    %777 = vmax.xlane.f32.xlu0 %v776
    %v778 = vpop.xlane.xlu0 %777
    %v779 = vsel %vm157, %v609, -inf
    %780 = vmax.xlane.f32.xlu0 %v779
    %v781 = vpop.xlane.xlu0 %780
    %v782 = vsel %vm157, %v685, -inf
    %783 = vmax.xlane.f32.xlu0 %v782
    %v784 = vpop.xlane.xlu0 %783
    %v785 = vsel %vm157, %v761, -inf
    %786 = vmax.xlane.f32.xlu0 %v785
    %v787 = vpop.xlane.xlu0 %786
    %v788 = vsub.f32 %v229, %v766
    %v789 = vsub.f32 %v305, %v769
    %v790 = vsub.f32 %v381, %v772
    %v791 = vsub.f32 %v457, %v775
    %v792 = vsub.f32 %v533, %v778
    %v793 = vsub.f32 %v609, %v781
    %v794 = vsub.f32 %v685, %v784
    %v795 = vsub.f32 %v761, %v787
    %v796 = vmul.f32 %v788, 1.442695
    %v797 = vpow.pop %v796
    %v798 = vmul.f32 %v789, 1.442695
    %v799 = vpow.pop %v798
    %v800 = vmul.f32 %v790, 1.442695
    %v801 = vpow.pop %v800
    %v802 = vmul.f32 %v791, 1.442695
    %v803 = vpow.pop %v802
    %v804 = vmul.f32 %v792, 1.442695
    %v805 = vpow.pop %v804
    %v806 = vmul.f32 %v793, 1.442695
    %v807 = vpow.pop %v806
    %v808 = vmul.f32 %v794, 1.442695
    %v809 = vpow.pop %v808
    %v810 = vmul.f32 %v795, 1.442695
    %v811 = vpow.pop %v810
    %v812 = vsel %vm157, %v797, 0.0
    %813 = vadd.xlane.f32.xlu0 %v812
    %v814 = vpop.xlane.xlu0 %813
    %v815 = vsel %vm157, %v799, 0.0
    %816 = vadd.xlane.f32.xlu0 %v815
    %v817 = vpop.xlane.xlu0 %816
    %v818 = vsel %vm157, %v801, 0.0
    %819 = vadd.xlane.f32.xlu0 %v818
    %v820 = vpop.xlane.xlu0 %819
    %v821 = vsel %vm157, %v803, 0.0
    %822 = vadd.xlane.f32.xlu0 %v821
    %v823 = vpop.xlane.xlu0 %822
    %v824 = vsel %vm157, %v805, 0.0
    %825 = vadd.xlane.f32.xlu0 %v824
    %v826 = vpop.xlane.xlu0 %825
    %v827 = vsel %vm157, %v807, 0.0
    %828 = vadd.xlane.f32.xlu0 %v827
    %v829 = vpop.xlane.xlu0 %828
    %v830 = vsel %vm157, %v809, 0.0
    %831 = vadd.xlane.f32.xlu0 %v830
    %v832 = vpop.xlane.xlu0 %831
    %v833 = vsel %vm157, %v811, 0.0
    %834 = vadd.xlane.f32.xlu0 %v833
    %v835 = vpop.xlane.xlu0 %834
    %v836 = vrcp.pop %v814
    %v837 = vrcp.pop %v817
    %v838 = vrcp.pop %v820
    %v839 = vrcp.pop %v823
    %v840 = vrcp.pop %v826
    %v841 = vrcp.pop %v829
    %v842 = vrcp.pop %v832
    %v843 = vrcp.pop %v835
    %v844 = vmul.f32 %v797, %v836
    %v845 = vmul.f32 %v799, %v837
    %v846 = vmul.f32 %v801, %v838
    %v847 = vmul.f32 %v803, %v839
    %v848 = vmul.f32 %v805, %v840
    %v849 = vmul.f32 %v807, %v841
    %v850 = vmul.f32 %v809, %v842
    %v851 = vmul.f32 %v811, %v843
    %v852 = vadd.f32 %v844, %v846
    %v853 = vadd.f32 %v845, %v847
    %v854 = vadd.f32 %v852, %v848
    %v855 = vadd.f32 %v853, %v849
    %v856 = vadd.f32 %v854, %v850
    %v857 = vadd.f32 %v855, %v851
    %v858 = vmul.f32 %v856, 0.25
    %v859 = vmul.f32 %v857, 0.25
    %860 = vst.msk [vmem:[#allocation4] sm:$0xff] %vm157, %v858
    %861 = vst.msk [vmem:[#allocation4 + $0x8] sm:$0xff] %vm157, %v859
    %862 = vrot.lane.b32.xlu0 %v117, 64
    %v863 = vpop.permute.xlu0 %862
    %v866 = vsel %vm157, %v844, 0
    %868 = vmatprep.subr.mxu0 0.0
    %869 = vmatpush1.msra.mxu0 %v863
    %870 = vmatprep.subr.mxu0 0.0
    %871 = vmatpush1.msra.mxu0 0.0
    %872 = vmatprep.subr.mxu0 0.0
    %873 = vmatpush1.msra.mxu0 0.0
    %874 = vmatprep.subr.mxu0 0.0
    %875 = vmatpush1.msra.mxu0 0.0
    %876 = vmatprep.subr.mxu0 0.0
    %877 = vmatpush1.msra.mxu0 0.0
    %878 = vmatprep.subr.mxu0 0.0
    %879 = vmatpush1.msra.mxu0 0.0
    %880 = vmatprep.subr.mxu0 0.0
    %881 = vmatpush1.msra.mxu0 0.0
    %882 = vmatprep.subr.mxu0 0.0
    %883 = vmatpush1.msra.mxu0 0.0
    %884 = vmatprep.subr.mxu0 0.0
    %885 = vmatpush1.msra.mxu0 0.0
    %886 = vmatprep.subr.mxu0 0.0
    %887 = vmatpush1.msra.mxu0 0.0
    %888 = vmatprep.subr.mxu0 0.0
    %889 = vmatpush1.msra.mxu0 0.0
    %890 = vmatprep.subr.mxu0 0.0
    %891 = vmatpush1.msra.mxu0 0.0
    %892 = vmatprep.subr.mxu0 0.0
    %893 = vmatpush1.msra.mxu0 0.0
    %894 = vmatprep.subr.mxu0 0.0
    %895 = vmatpush1.msra.mxu0 0.0
    %896 = vmatprep.subr.mxu0 0.0
    %897 = vmatpush1.msra.mxu0 0.0
    %898 = vmatprep.subr.mxu0 0.0
    %899 = vmatpush1.msra.mxu0 0.0
    %900 = vmatprep.subr.mxu0 0.0
    %901 = vmatpush1.msra.mxu0 0.0
    %902 = vmatprep.subr.mxu0 0.0
    %903 = vmatpush1.msra.mxu0 0.0
    %904 = vmatprep.subr.mxu0 0.0
    %905 = vmatpush1.msra.mxu0 0.0
    %906 = vmatprep.subr.mxu0 0.0
    %907 = vmatpush1.msra.mxu0 0.0
    %908 = vmatprep.subr.mxu0 0.0
    %909 = vmatpush1.msra.mxu0 0.0
    %910 = vmatprep.subr.mxu0 0.0
    %911 = vmatpush1.msra.mxu0 0.0
    %912 = vmatprep.subr.mxu0 0.0
    %913 = vmatpush1.msra.mxu0 0.0
    %914 = vmatprep.subr.mxu0 0.0
    %915 = vmatpush1.msra.mxu0 0.0
    %916 = vmatprep.subr.mxu0 0.0
    %917 = vmatpush1.msra.mxu0 0.0
    %918 = vmatprep.subr.mxu0 0.0
    %919 = vmatpush1.msra.mxu0 0.0
    %920 = vmatprep.subr.mxu0 0.0
    %921 = vmatpush1.msra.mxu0 0.0
    %922 = vmatprep.subr.mxu0 0.0
    %923 = vmatpush1.msra.mxu0 0.0
    %924 = vmatprep.subr.mxu0 0.0
    %925 = vmatpush1.msra.mxu0 0.0
    %926 = vmatprep.subr.mxu0 0.0
    %927 = vmatpush1.msra.mxu0 0.0
    %928 = vmatprep.subr.mxu0 0.0
    %929 = vmatpush1.msra.mxu0 0.0
    %930 = vmatprep.subr.mxu0 0.0
    %931 = vmatpush1.msra.mxu0 0.0
    %932 = vmatprep.mubr.f32.mxu0 0.0
    %933 = vmatmul.mubr.f32.gmra.mrb[0].mxu0 %v866
    %v934 = vpop.f32.mrb[0].mxu0
    %v935 = vadd.f32 0.0, %v934
    %v936 = vpop.f32.mrb[0].mxu0
    %937 = vdwg.mxu0
    %938 = vrot.lane.b32.xlu0 %v122, 64
    %v939 = vpop.permute.xlu0 %938
    %v942 = vsel %vm157, %v845, 0
    %944 = vmatprep.subr.mxu0 0.0
    %945 = vmatpush1.msra.mxu0 %v939
    %946 = vmatprep.subr.mxu0 0.0
    %947 = vmatpush1.msra.mxu0 0.0
    %948 = vmatprep.subr.mxu0 0.0
    %949 = vmatpush1.msra.mxu0 0.0
    %950 = vmatprep.subr.mxu0 0.0
    %951 = vmatpush1.msra.mxu0 0.0
    %952 = vmatprep.subr.mxu0 0.0
    %953 = vmatpush1.msra.mxu0 0.0
    %954 = vmatprep.subr.mxu0 0.0
    %955 = vmatpush1.msra.mxu0 0.0
    %956 = vmatprep.subr.mxu0 0.0
    %957 = vmatpush1.msra.mxu0 0.0
    %958 = vmatprep.subr.mxu0 0.0
    %959 = vmatpush1.msra.mxu0 0.0
    %960 = vmatprep.subr.mxu0 0.0
    %961 = vmatpush1.msra.mxu0 0.0
    %962 = vmatprep.subr.mxu0 0.0
    %963 = vmatpush1.msra.mxu0 0.0
    %964 = vmatprep.subr.mxu0 0.0
    %965 = vmatpush1.msra.mxu0 0.0
    %966 = vmatprep.subr.mxu0 0.0
    %967 = vmatpush1.msra.mxu0 0.0
    %968 = vmatprep.subr.mxu0 0.0
    %969 = vmatpush1.msra.mxu0 0.0
    %970 = vmatprep.subr.mxu0 0.0
    %971 = vmatpush1.msra.mxu0 0.0
    %972 = vmatprep.subr.mxu0 0.0
    %973 = vmatpush1.msra.mxu0 0.0
    %974 = vmatprep.subr.mxu0 0.0
    %975 = vmatpush1.msra.mxu0 0.0
    %976 = vmatprep.subr.mxu0 0.0
    %977 = vmatpush1.msra.mxu0 0.0
    %978 = vmatprep.subr.mxu0 0.0
    %979 = vmatpush1.msra.mxu0 0.0
    %980 = vmatprep.subr.mxu0 0.0
    %981 = vmatpush1.msra.mxu0 0.0
    %982 = vmatprep.subr.mxu0 0.0
    %983 = vmatpush1.msra.mxu0 0.0
    %984 = vmatprep.subr.mxu0 0.0
    %985 = vmatpush1.msra.mxu0 0.0
    %986 = vmatprep.subr.mxu0 0.0
    %987 = vmatpush1.msra.mxu0 0.0
    %988 = vmatprep.subr.mxu0 0.0
    %989 = vmatpush1.msra.mxu0 0.0
    %990 = vmatprep.subr.mxu0 0.0
    %991 = vmatpush1.msra.mxu0 0.0
    %992 = vmatprep.subr.mxu0 0.0
    %993 = vmatpush1.msra.mxu0 0.0
    %994 = vmatprep.subr.mxu0 0.0
    %995 = vmatpush1.msra.mxu0 0.0
    %996 = vmatprep.subr.mxu0 0.0
    %997 = vmatpush1.msra.mxu0 0.0
    %998 = vmatprep.subr.mxu0 0.0
    %999 = vmatpush1.msra.mxu0 0.0
    %1000 = vmatprep.subr.mxu0 0.0
    %1001 = vmatpush1.msra.mxu0 0.0
    %1002 = vmatprep.subr.mxu0 0.0
    %1003 = vmatpush1.msra.mxu0 0.0
    %1004 = vmatprep.subr.mxu0 0.0
    %1005 = vmatpush1.msra.mxu0 0.0
    %1006 = vmatprep.subr.mxu0 0.0
    %1007 = vmatpush1.msra.mxu0 0.0
    %1008 = vmatprep.mubr.f32.mxu0 0.0
    %1009 = vmatmul.mubr.f32.gmra.mrb[0].mxu0 %v942
    %v1010 = vpop.f32.mrb[0].mxu0
    %v1011 = vadd.f32 0.0, %v1010
    %v1012 = vpop.f32.mrb[0].mxu0
    %1013 = vdwg.mxu0
    %1014 = vrot.lane.b32.xlu0 %v144, 64
    %v1015 = vpop.permute.xlu0 %1014
    %v1018 = vsel %vm157, %v846, 0
    %1020 = vmatprep.subr.mxu0 0.0
    %1021 = vmatpush1.msra.mxu0 %v1015
    %1022 = vmatprep.subr.mxu0 0.0
    %1023 = vmatpush1.msra.mxu0 0.0
    %1024 = vmatprep.subr.mxu0 0.0
    %1025 = vmatpush1.msra.mxu0 0.0
    %1026 = vmatprep.subr.mxu0 0.0
    %1027 = vmatpush1.msra.mxu0 0.0
    %1028 = vmatprep.subr.mxu0 0.0
    %1029 = vmatpush1.msra.mxu0 0.0
    %1030 = vmatprep.subr.mxu0 0.0
    %1031 = vmatpush1.msra.mxu0 0.0
    %1032 = vmatprep.subr.mxu0 0.0
    %1033 = vmatpush1.msra.mxu0 0.0
    %1034 = vmatprep.subr.mxu0 0.0
    %1035 = vmatpush1.msra.mxu0 0.0
    %1036 = vmatprep.subr.mxu0 0.0
    %1037 = vmatpush1.msra.mxu0 0.0
    %1038 = vmatprep.subr.mxu0 0.0
    %1039 = vmatpush1.msra.mxu0 0.0
    %1040 = vmatprep.subr.mxu0 0.0
    %1041 = vmatpush1.msra.mxu0 0.0
    %1042 = vmatprep.subr.mxu0 0.0
    %1043 = vmatpush1.msra.mxu0 0.0
    %1044 = vmatprep.subr.mxu0 0.0
    %1045 = vmatpush1.msra.mxu0 0.0
    %1046 = vmatprep.subr.mxu0 0.0
    %1047 = vmatpush1.msra.mxu0 0.0
    %1048 = vmatprep.subr.mxu0 0.0
    %1049 = vmatpush1.msra.mxu0 0.0
    %1050 = vmatprep.subr.mxu0 0.0
    %1051 = vmatpush1.msra.mxu0 0.0
    %1052 = vmatprep.subr.mxu0 0.0
    %1053 = vmatpush1.msra.mxu0 0.0
    %1054 = vmatprep.subr.mxu0 0.0
    %1055 = vmatpush1.msra.mxu0 0.0
    %1056 = vmatprep.subr.mxu0 0.0
    %1057 = vmatpush1.msra.mxu0 0.0
    %1058 = vmatprep.subr.mxu0 0.0
    %1059 = vmatpush1.msra.mxu0 0.0
    %1060 = vmatprep.subr.mxu0 0.0
    %1061 = vmatpush1.msra.mxu0 0.0
    %1062 = vmatprep.subr.mxu0 0.0
    %1063 = vmatpush1.msra.mxu0 0.0
    %1064 = vmatprep.subr.mxu0 0.0
    %1065 = vmatpush1.msra.mxu0 0.0
    %1066 = vmatprep.subr.mxu0 0.0
    %1067 = vmatpush1.msra.mxu0 0.0
    %1068 = vmatprep.subr.mxu0 0.0
    %1069 = vmatpush1.msra.mxu0 0.0
    %1070 = vmatprep.subr.mxu0 0.0
    %1071 = vmatpush1.msra.mxu0 0.0
    %1072 = vmatprep.subr.mxu0 0.0
    %1073 = vmatpush1.msra.mxu0 0.0
    %1074 = vmatprep.subr.mxu0 0.0
    %1075 = vmatpush1.msra.mxu0 0.0
    %1076 = vmatprep.subr.mxu0 0.0
    %1077 = vmatpush1.msra.mxu0 0.0
    %1078 = vmatprep.subr.mxu0 0.0
    %1079 = vmatpush1.msra.mxu0 0.0
    %1080 = vmatprep.subr.mxu0 0.0
    %1081 = vmatpush1.msra.mxu0 0.0
    %1082 = vmatprep.subr.mxu0 0.0
    %1083 = vmatpush1.msra.mxu0 0.0
    %1084 = vmatprep.mubr.f32.mxu0 0.0
    %1085 = vmatmul.mubr.f32.gmra.mrb[0].mxu0 %v1018
    %v1086 = vpop.f32.mrb[0].mxu0
    %v1087 = vadd.f32 0.0, %v1086
    %v1088 = vpop.f32.mrb[0].mxu0
    %1089 = vdwg.mxu0
    %1090 = vrot.lane.b32.xlu0 %v146, 64
    %v1091 = vpop.permute.xlu0 %1090
    %v1094 = vsel %vm157, %v847, 0
    %1096 = vmatprep.subr.mxu0 0.0
    %1097 = vmatpush1.msra.mxu0 %v1091
    %1098 = vmatprep.subr.mxu0 0.0
    %1099 = vmatpush1.msra.mxu0 0.0
    %1100 = vmatprep.subr.mxu0 0.0
    %1101 = vmatpush1.msra.mxu0 0.0
    %1102 = vmatprep.subr.mxu0 0.0
    %1103 = vmatpush1.msra.mxu0 0.0
    %1104 = vmatprep.subr.mxu0 0.0
    %1105 = vmatpush1.msra.mxu0 0.0
    %1106 = vmatprep.subr.mxu0 0.0
    %1107 = vmatpush1.msra.mxu0 0.0
    %1108 = vmatprep.subr.mxu0 0.0
    %1109 = vmatpush1.msra.mxu0 0.0
    %1110 = vmatprep.subr.mxu0 0.0
    %1111 = vmatpush1.msra.mxu0 0.0
    %1112 = vmatprep.subr.mxu0 0.0
    %1113 = vmatpush1.msra.mxu0 0.0
    %1114 = vmatprep.subr.mxu0 0.0
    %1115 = vmatpush1.msra.mxu0 0.0
    %1116 = vmatprep.subr.mxu0 0.0
    %1117 = vmatpush1.msra.mxu0 0.0
    %1118 = vmatprep.subr.mxu0 0.0
    %1119 = vmatpush1.msra.mxu0 0.0
    %1120 = vmatprep.subr.mxu0 0.0
    %1121 = vmatpush1.msra.mxu0 0.0
    %1122 = vmatprep.subr.mxu0 0.0
    %1123 = vmatpush1.msra.mxu0 0.0
    %1124 = vmatprep.subr.mxu0 0.0
    %1125 = vmatpush1.msra.mxu0 0.0
    %1126 = vmatprep.subr.mxu0 0.0
    %1127 = vmatpush1.msra.mxu0 0.0
    %1128 = vmatprep.subr.mxu0 0.0
    %1129 = vmatpush1.msra.mxu0 0.0
    %1130 = vmatprep.subr.mxu0 0.0
    %1131 = vmatpush1.msra.mxu0 0.0
    %1132 = vmatprep.subr.mxu0 0.0
    %1133 = vmatpush1.msra.mxu0 0.0
    %1134 = vmatprep.subr.mxu0 0.0
    %1135 = vmatpush1.msra.mxu0 0.0
    %1136 = vmatprep.subr.mxu0 0.0
    %1137 = vmatpush1.msra.mxu0 0.0
    %1138 = vmatprep.subr.mxu0 0.0
    %1139 = vmatpush1.msra.mxu0 0.0
    %1140 = vmatprep.subr.mxu0 0.0
    %1141 = vmatpush1.msra.mxu0 0.0
    %1142 = vmatprep.subr.mxu0 0.0
    %1143 = vmatpush1.msra.mxu0 0.0
    %1144 = vmatprep.subr.mxu0 0.0
    %1145 = vmatpush1.msra.mxu0 0.0
    %1146 = vmatprep.subr.mxu0 0.0
    %1147 = vmatpush1.msra.mxu0 0.0
    %1148 = vmatprep.subr.mxu0 0.0
    %1149 = vmatpush1.msra.mxu0 0.0
    %1150 = vmatprep.subr.mxu0 0.0
    %1151 = vmatpush1.msra.mxu0 0.0
    %1152 = vmatprep.subr.mxu0 0.0
    %1153 = vmatpush1.msra.mxu0 0.0
    %1154 = vmatprep.subr.mxu0 0.0
    %1155 = vmatpush1.msra.mxu0 0.0
    %1156 = vmatprep.subr.mxu0 0.0
    %1157 = vmatpush1.msra.mxu0 0.0
    %1158 = vmatprep.subr.mxu0 0.0
    %1159 = vmatpush1.msra.mxu0 0.0
    %1160 = vmatprep.mubr.f32.mxu0 0.0
    %1161 = vmatmul.mubr.f32.gmra.mrb[0].mxu0 %v1094
    %v1162 = vpop.f32.mrb[0].mxu0
    %v1163 = vadd.f32 0.0, %v1162
    %v1164 = vpop.f32.mrb[0].mxu0
    %1165 = vdwg.mxu0
    %1166 = vrot.lane.b32.xlu0 %v148, 64
    %v1167 = vpop.permute.xlu0 %1166
    %v1170 = vsel %vm157, %v848, 0
    %1172 = vmatprep.subr.mxu0 0.0
    %1173 = vmatpush1.msra.mxu0 %v1167
    %1174 = vmatprep.subr.mxu0 0.0
    %1175 = vmatpush1.msra.mxu0 0.0
    %1176 = vmatprep.subr.mxu0 0.0
    %1177 = vmatpush1.msra.mxu0 0.0
    %1178 = vmatprep.subr.mxu0 0.0
    %1179 = vmatpush1.msra.mxu0 0.0
    %1180 = vmatprep.subr.mxu0 0.0
    %1181 = vmatpush1.msra.mxu0 0.0
    %1182 = vmatprep.subr.mxu0 0.0
    %1183 = vmatpush1.msra.mxu0 0.0
    %1184 = vmatprep.subr.mxu0 0.0
    %1185 = vmatpush1.msra.mxu0 0.0
    %1186 = vmatprep.subr.mxu0 0.0
    %1187 = vmatpush1.msra.mxu0 0.0
    %1188 = vmatprep.subr.mxu0 0.0
    %1189 = vmatpush1.msra.mxu0 0.0
    %1190 = vmatprep.subr.mxu0 0.0
    %1191 = vmatpush1.msra.mxu0 0.0
    %1192 = vmatprep.subr.mxu0 0.0
    %1193 = vmatpush1.msra.mxu0 0.0
    %1194 = vmatprep.subr.mxu0 0.0
    %1195 = vmatpush1.msra.mxu0 0.0
    %1196 = vmatprep.subr.mxu0 0.0
    %1197 = vmatpush1.msra.mxu0 0.0
    %1198 = vmatprep.subr.mxu0 0.0
    %1199 = vmatpush1.msra.mxu0 0.0
    %1200 = vmatprep.subr.mxu0 0.0
    %1201 = vmatpush1.msra.mxu0 0.0
    %1202 = vmatprep.subr.mxu0 0.0
    %1203 = vmatpush1.msra.mxu0 0.0
    %1204 = vmatprep.subr.mxu0 0.0
    %1205 = vmatpush1.msra.mxu0 0.0
    %1206 = vmatprep.subr.mxu0 0.0
    %1207 = vmatpush1.msra.mxu0 0.0
    %1208 = vmatprep.subr.mxu0 0.0
    %1209 = vmatpush1.msra.mxu0 0.0
    %1210 = vmatprep.subr.mxu0 0.0
    %1211 = vmatpush1.msra.mxu0 0.0
    %1212 = vmatprep.subr.mxu0 0.0
    %1213 = vmatpush1.msra.mxu0 0.0
    %1214 = vmatprep.subr.mxu0 0.0
    %1215 = vmatpush1.msra.mxu0 0.0
    %1216 = vmatprep.subr.mxu0 0.0
    %1217 = vmatpush1.msra.mxu0 0.0
    %1218 = vmatprep.subr.mxu0 0.0
    %1219 = vmatpush1.msra.mxu0 0.0
    %1220 = vmatprep.subr.mxu0 0.0
    %1221 = vmatpush1.msra.mxu0 0.0
    %1222 = vmatprep.subr.mxu0 0.0
    %1223 = vmatpush1.msra.mxu0 0.0
    %1224 = vmatprep.subr.mxu0 0.0
    %1225 = vmatpush1.msra.mxu0 0.0
    %1226 = vmatprep.subr.mxu0 0.0
    %1227 = vmatpush1.msra.mxu0 0.0
    %1228 = vmatprep.subr.mxu0 0.0
    %1229 = vmatpush1.msra.mxu0 0.0
    %1230 = vmatprep.subr.mxu0 0.0
    %1231 = vmatpush1.msra.mxu0 0.0
    %1232 = vmatprep.subr.mxu0 0.0
    %1233 = vmatpush1.msra.mxu0 0.0
    %1234 = vmatprep.subr.mxu0 0.0
    %1235 = vmatpush1.msra.mxu0 0.0
    %1236 = vmatprep.mubr.f32.mxu0 0.0
    %1237 = vmatmul.mubr.f32.gmra.mrb[0].mxu0 %v1170
    %v1238 = vpop.f32.mrb[0].mxu0
    %v1239 = vadd.f32 0.0, %v1238
    %v1240 = vpop.f32.mrb[0].mxu0
    %1241 = vdwg.mxu0
    %1242 = vrot.lane.b32.xlu0 %v150, 64
    %v1243 = vpop.permute.xlu0 %1242
    %v1246 = vsel %vm157, %v849, 0
    %1248 = vmatprep.subr.mxu0 0.0
    %1249 = vmatpush1.msra.mxu0 %v1243
    %1250 = vmatprep.subr.mxu0 0.0
    %1251 = vmatpush1.msra.mxu0 0.0
    %1252 = vmatprep.subr.mxu0 0.0
    %1253 = vmatpush1.msra.mxu0 0.0
    %1254 = vmatprep.subr.mxu0 0.0
    %1255 = vmatpush1.msra.mxu0 0.0
    %1256 = vmatprep.subr.mxu0 0.0
    %1257 = vmatpush1.msra.mxu0 0.0
    %1258 = vmatprep.subr.mxu0 0.0
    %1259 = vmatpush1.msra.mxu0 0.0
    %1260 = vmatprep.subr.mxu0 0.0
    %1261 = vmatpush1.msra.mxu0 0.0
    %1262 = vmatprep.subr.mxu0 0.0
    %1263 = vmatpush1.msra.mxu0 0.0
    %1264 = vmatprep.subr.mxu0 0.0
    %1265 = vmatpush1.msra.mxu0 0.0
    %1266 = vmatprep.subr.mxu0 0.0
    %1267 = vmatpush1.msra.mxu0 0.0
    %1268 = vmatprep.subr.mxu0 0.0
    %1269 = vmatpush1.msra.mxu0 0.0
    %1270 = vmatprep.subr.mxu0 0.0
    %1271 = vmatpush1.msra.mxu0 0.0
    %1272 = vmatprep.subr.mxu0 0.0
    %1273 = vmatpush1.msra.mxu0 0.0
    %1274 = vmatprep.subr.mxu0 0.0
    %1275 = vmatpush1.msra.mxu0 0.0
    %1276 = vmatprep.subr.mxu0 0.0
    %1277 = vmatpush1.msra.mxu0 0.0
    %1278 = vmatprep.subr.mxu0 0.0
    %1279 = vmatpush1.msra.mxu0 0.0
    %1280 = vmatprep.subr.mxu0 0.0
    %1281 = vmatpush1.msra.mxu0 0.0
    %1282 = vmatprep.subr.mxu0 0.0
    %1283 = vmatpush1.msra.mxu0 0.0
    %1284 = vmatprep.subr.mxu0 0.0
    %1285 = vmatpush1.msra.mxu0 0.0
    %1286 = vmatprep.subr.mxu0 0.0
    %1287 = vmatpush1.msra.mxu0 0.0
    %1288 = vmatprep.subr.mxu0 0.0
    %1289 = vmatpush1.msra.mxu0 0.0
    %1290 = vmatprep.subr.mxu0 0.0
    %1291 = vmatpush1.msra.mxu0 0.0
    %1292 = vmatprep.subr.mxu0 0.0
    %1293 = vmatpush1.msra.mxu0 0.0
    %1294 = vmatprep.subr.mxu0 0.0
    %1295 = vmatpush1.msra.mxu0 0.0
    %1296 = vmatprep.subr.mxu0 0.0
    %1297 = vmatpush1.msra.mxu0 0.0
    %1298 = vmatprep.subr.mxu0 0.0
    %1299 = vmatpush1.msra.mxu0 0.0
    %1300 = vmatprep.subr.mxu0 0.0
    %1301 = vmatpush1.msra.mxu0 0.0
    %1302 = vmatprep.subr.mxu0 0.0
    %1303 = vmatpush1.msra.mxu0 0.0
    %1304 = vmatprep.subr.mxu0 0.0
    %1305 = vmatpush1.msra.mxu0 0.0
    %1306 = vmatprep.subr.mxu0 0.0
    %1307 = vmatpush1.msra.mxu0 0.0
    %1308 = vmatprep.subr.mxu0 0.0
    %1309 = vmatpush1.msra.mxu0 0.0
    %1310 = vmatprep.subr.mxu0 0.0
    %1311 = vmatpush1.msra.mxu0 0.0
    %1312 = vmatprep.mubr.f32.mxu0 0.0
    %1313 = vmatmul.mubr.f32.gmra.mrb[0].mxu0 %v1246
    %v1314 = vpop.f32.mrb[0].mxu0
    %v1315 = vadd.f32 0.0, %v1314
    %v1316 = vpop.f32.mrb[0].mxu0
    %1317 = vdwg.mxu0
    %1318 = vrot.lane.b32.xlu0 %v152, 64
    %v1319 = vpop.permute.xlu0 %1318
    %v1322 = vsel %vm157, %v850, 0
    %1324 = vmatprep.subr.mxu0 0.0
    %1325 = vmatpush1.msra.mxu0 %v1319
    %1326 = vmatprep.subr.mxu0 0.0
    %1327 = vmatpush1.msra.mxu0 0.0
    %1328 = vmatprep.subr.mxu0 0.0
    %1329 = vmatpush1.msra.mxu0 0.0
    %1330 = vmatprep.subr.mxu0 0.0
    %1331 = vmatpush1.msra.mxu0 0.0
    %1332 = vmatprep.subr.mxu0 0.0
    %1333 = vmatpush1.msra.mxu0 0.0
    %1334 = vmatprep.subr.mxu0 0.0
    %1335 = vmatpush1.msra.mxu0 0.0
    %1336 = vmatprep.subr.mxu0 0.0
    %1337 = vmatpush1.msra.mxu0 0.0
    %1338 = vmatprep.subr.mxu0 0.0
    %1339 = vmatpush1.msra.mxu0 0.0
    %1340 = vmatprep.subr.mxu0 0.0
    %1341 = vmatpush1.msra.mxu0 0.0
    %1342 = vmatprep.subr.mxu0 0.0
    %1343 = vmatpush1.msra.mxu0 0.0
    %1344 = vmatprep.subr.mxu0 0.0
    %1345 = vmatpush1.msra.mxu0 0.0
    %1346 = vmatprep.subr.mxu0 0.0
    %1347 = vmatpush1.msra.mxu0 0.0
    %1348 = vmatprep.subr.mxu0 0.0
    %1349 = vmatpush1.msra.mxu0 0.0
    %1350 = vmatprep.subr.mxu0 0.0
    %1351 = vmatpush1.msra.mxu0 0.0
    %1352 = vmatprep.subr.mxu0 0.0
    %1353 = vmatpush1.msra.mxu0 0.0
    %1354 = vmatprep.subr.mxu0 0.0
    %1355 = vmatpush1.msra.mxu0 0.0
    %1356 = vmatprep.subr.mxu0 0.0
    %1357 = vmatpush1.msra.mxu0 0.0
    %1358 = vmatprep.subr.mxu0 0.0
    %1359 = vmatpush1.msra.mxu0 0.0
    %1360 = vmatprep.subr.mxu0 0.0
    %1361 = vmatpush1.msra.mxu0 0.0
    %1362 = vmatprep.subr.mxu0 0.0
    %1363 = vmatpush1.msra.mxu0 0.0
    %1364 = vmatprep.subr.mxu0 0.0
    %1365 = vmatpush1.msra.mxu0 0.0
    %1366 = vmatprep.subr.mxu0 0.0
    %1367 = vmatpush1.msra.mxu0 0.0
    %1368 = vmatprep.subr.mxu0 0.0
    %1369 = vmatpush1.msra.mxu0 0.0
    %1370 = vmatprep.subr.mxu0 0.0
    %1371 = vmatpush1.msra.mxu0 0.0
    %1372 = vmatprep.subr.mxu0 0.0
    %1373 = vmatpush1.msra.mxu0 0.0
    %1374 = vmatprep.subr.mxu0 0.0
    %1375 = vmatpush1.msra.mxu0 0.0
    %1376 = vmatprep.subr.mxu0 0.0
    %1377 = vmatpush1.msra.mxu0 0.0
    %1378 = vmatprep.subr.mxu0 0.0
    %1379 = vmatpush1.msra.mxu0 0.0
    %1380 = vmatprep.subr.mxu0 0.0
    %1381 = vmatpush1.msra.mxu0 0.0
    %1382 = vmatprep.subr.mxu0 0.0
    %1383 = vmatpush1.msra.mxu0 0.0
    %1384 = vmatprep.subr.mxu0 0.0
    %1385 = vmatpush1.msra.mxu0 0.0
    %1386 = vmatprep.subr.mxu0 0.0
    %1387 = vmatpush1.msra.mxu0 0.0
    %1388 = vmatprep.mubr.f32.mxu0 0.0
    %1389 = vmatmul.mubr.f32.gmra.mrb[0].mxu0 %v1322
    %v1390 = vpop.f32.mrb[0].mxu0
    %v1391 = vadd.f32 0.0, %v1390
    %v1392 = vpop.f32.mrb[0].mxu0
    %1393 = vdwg.mxu0
    %1394 = vrot.lane.b32.xlu0 %v154, 64
    %v1395 = vpop.permute.xlu0 %1394
    %v1398 = vsel %vm157, %v851, 0
    %1400 = vmatprep.subr.mxu0 0.0
    %1401 = vmatpush1.msra.mxu0 %v1395
    %1402 = vmatprep.subr.mxu0 0.0
    %1403 = vmatpush1.msra.mxu0 0.0
    %1404 = vmatprep.subr.mxu0 0.0
    %1405 = vmatpush1.msra.mxu0 0.0
    %1406 = vmatprep.subr.mxu0 0.0
    %1407 = vmatpush1.msra.mxu0 0.0
    %1408 = vmatprep.subr.mxu0 0.0
    %1409 = vmatpush1.msra.mxu0 0.0
    %1410 = vmatprep.subr.mxu0 0.0
    %1411 = vmatpush1.msra.mxu0 0.0
    %1412 = vmatprep.subr.mxu0 0.0
    %1413 = vmatpush1.msra.mxu0 0.0
    %1414 = vmatprep.subr.mxu0 0.0
    %1415 = vmatpush1.msra.mxu0 0.0
    %1416 = vmatprep.subr.mxu0 0.0
    %1417 = vmatpush1.msra.mxu0 0.0
    %1418 = vmatprep.subr.mxu0 0.0
    %1419 = vmatpush1.msra.mxu0 0.0
    %1420 = vmatprep.subr.mxu0 0.0
    %1421 = vmatpush1.msra.mxu0 0.0
    %1422 = vmatprep.subr.mxu0 0.0
    %1423 = vmatpush1.msra.mxu0 0.0
    %1424 = vmatprep.subr.mxu0 0.0
    %1425 = vmatpush1.msra.mxu0 0.0
    %1426 = vmatprep.subr.mxu0 0.0
    %1427 = vmatpush1.msra.mxu0 0.0
    %1428 = vmatprep.subr.mxu0 0.0
    %1429 = vmatpush1.msra.mxu0 0.0
    %1430 = vmatprep.subr.mxu0 0.0
    %1431 = vmatpush1.msra.mxu0 0.0
    %1432 = vmatprep.subr.mxu0 0.0
    %1433 = vmatpush1.msra.mxu0 0.0
    %1434 = vmatprep.subr.mxu0 0.0
    %1435 = vmatpush1.msra.mxu0 0.0
    %1436 = vmatprep.subr.mxu0 0.0
    %1437 = vmatpush1.msra.mxu0 0.0
    %1438 = vmatprep.subr.mxu0 0.0
    %1439 = vmatpush1.msra.mxu0 0.0
    %1440 = vmatprep.subr.mxu0 0.0
    %1441 = vmatpush1.msra.mxu0 0.0
    %1442 = vmatprep.subr.mxu0 0.0
    %1443 = vmatpush1.msra.mxu0 0.0
    %1444 = vmatprep.subr.mxu0 0.0
    %1445 = vmatpush1.msra.mxu0 0.0
    %1446 = vmatprep.subr.mxu0 0.0
    %1447 = vmatpush1.msra.mxu0 0.0
    %1448 = vmatprep.subr.mxu0 0.0
    %1449 = vmatpush1.msra.mxu0 0.0
    %1450 = vmatprep.subr.mxu0 0.0
    %1451 = vmatpush1.msra.mxu0 0.0
    %1452 = vmatprep.subr.mxu0 0.0
    %1453 = vmatpush1.msra.mxu0 0.0
    %1454 = vmatprep.subr.mxu0 0.0
    %1455 = vmatpush1.msra.mxu0 0.0
    %1456 = vmatprep.subr.mxu0 0.0
    %1457 = vmatpush1.msra.mxu0 0.0
    %1458 = vmatprep.subr.mxu0 0.0
    %1459 = vmatpush1.msra.mxu0 0.0
    %1460 = vmatprep.subr.mxu0 0.0
    %1461 = vmatpush1.msra.mxu0 0.0
    %1462 = vmatprep.subr.mxu0 0.0
    %1463 = vmatpush1.msra.mxu0 0.0
    %1464 = vmatprep.mubr.f32.mxu0 0.0
    %1465 = vmatmul.mubr.f32.gmra.mrb[0].mxu0 %v1398
    %v1466 = vpop.f32.mrb[0].mxu0
    %v1467 = vadd.f32 0.0, %v1466
    %v1468 = vpop.f32.mrb[0].mxu0
    %1469 = vdwg.mxu0
    %1472 = vrot.lane.b32.xlu0 %v1087, 8
    %v1473 = vpop.permute.xlu0 %1472
    %1474 = vrot.lane.b32.xlu0 %v1163, 8
    %v1475 = vpop.permute.xlu0 %1474
    %1480 = vrot.lane.b32.xlu0 %v1239, 16
    %v1481 = vpop.permute.xlu0 %1480
    %1482 = vrot.lane.b32.xlu0 %v1315, 16
    %v1483 = vpop.permute.xlu0 %1482
    %1488 = vrot.lane.b32.xlu0 %v1391, 24
    %v1489 = vpop.permute.xlu0 %1488
    %1490 = vrot.lane.b32.xlu0 %v1467, 24
    %v1491 = vpop.permute.xlu0 %1490
    %v1494 = vsel %vm157, %v935, %v1473
    %v1495 = vsel %vm157, %v1011, %v1475
    %vm1496 = vcmask 130048
    %v1497 = vsel %vm1496, %v1494, %v1481
    %v1498 = vsel %vm1496, %v1495, %v1483
    %vm1499 = vcmask 195584
    %v1500 = vsel %vm1499, %v1497, %v1489
    %v1501 = vsel %vm1499, %v1498, %v1491
    %v1502 = vld [vmem:[%s3] sm:$0xff]
    %v1503 = vld [vmem:[%s3 + $0x8] sm:$0xff]
    %v1504 = vld [vmem:[%s3 + $0x10] sm:$0xff]
    %v1505 = vld [vmem:[%s3 + $0x18] sm:$0xff]
    %v1506 = vld [vmem:[%s3 + $0x20] sm:$0xff]
    %v1507 = vld [vmem:[%s3 + $0x28] sm:$0xff]
    %v1508 = vld [vmem:[%s3 + $0x30] sm:$0xff]
    %v1509 = vld [vmem:[%s3 + $0x38] sm:$0xff]
    %v1510 = vld [vmem:[%s3 + $0x40] sm:$0xff]
    %v1511 = vld [vmem:[%s3 + $0x48] sm:$0xff]
    %v1512 = vld [vmem:[%s3 + $0x50] sm:$0xff]
    %v1513 = vld [vmem:[%s3 + $0x58] sm:$0xff]
    %v1514 = vld [vmem:[%s6] sm:$0x3f]
    %v1515 = vlaneseq
    %v1516 = vshrl.u32 %v1515, 7
    %v1517 = vsub.s32 0, %v1516
    %v1518 = vrot.slane %v1514, %v1517
    %v1520 = vsel %vm43, %v1500, 0
    %v1523 = vsel %vm43, %v1501, 0
    %1525 = vmatprep.subr.mxu0 0.0
    %1526 = vmatpush1.msra.mxu0 %v1502
    %1527 = vmatprep.subr.mxu0 0.0
    %1528 = vmatpush1.msra.mxu0 %v1503
    %1529 = vmatprep.subr.mxu0 0.0
    %1530 = vmatpush1.msra.mxu0 %v1504
    %1531 = vmatprep.subr.mxu0 0.0
    %1532 = vmatpush1.msra.mxu0 %v1505
    %1533 = vmatprep.subr.mxu0 0.0
    %1534 = vmatpush1.msra.mxu0 0.0
    %1535 = vmatprep.subr.mxu0 0.0
    %1536 = vmatpush1.msra.mxu0 0.0
    %1537 = vmatprep.subr.mxu0 0.0
    %1538 = vmatpush1.msra.mxu0 0.0
    %1539 = vmatprep.subr.mxu0 0.0
    %1540 = vmatpush1.msra.mxu0 0.0
    %1541 = vmatprep.subr.mxu0 0.0
    %1542 = vmatpush1.msra.mxu0 0.0
    %1543 = vmatprep.subr.mxu0 0.0
    %1544 = vmatpush1.msra.mxu0 0.0
    %1545 = vmatprep.subr.mxu0 0.0
    %1546 = vmatpush1.msra.mxu0 0.0
    %1547 = vmatprep.subr.mxu0 0.0
    %1548 = vmatpush1.msra.mxu0 0.0
    %1549 = vmatprep.subr.mxu0 0.0
    %1550 = vmatpush1.msra.mxu0 0.0
    %1551 = vmatprep.subr.mxu0 0.0
    %1552 = vmatpush1.msra.mxu0 0.0
    %1553 = vmatprep.subr.mxu0 0.0
    %1554 = vmatpush1.msra.mxu0 0.0
    %1555 = vmatprep.subr.mxu0 0.0
    %1556 = vmatpush1.msra.mxu0 0.0
    %1557 = vmatprep.subr.mxu0 0.0
    %1558 = vmatpush1.msra.mxu0 0.0
    %1559 = vmatprep.subr.mxu0 0.0
    %1560 = vmatpush1.msra.mxu0 0.0
    %1561 = vmatprep.subr.mxu0 0.0
    %1562 = vmatpush1.msra.mxu0 0.0
    %1563 = vmatprep.subr.mxu0 0.0
    %1564 = vmatpush1.msra.mxu0 0.0
    %1565 = vmatprep.subr.mxu0 0.0
    %1566 = vmatpush1.msra.mxu0 0.0
    %1567 = vmatprep.subr.mxu0 0.0
    %1568 = vmatpush1.msra.mxu0 0.0
    %1569 = vmatprep.subr.mxu0 0.0
    %1570 = vmatpush1.msra.mxu0 0.0
    %1571 = vmatprep.subr.mxu0 0.0
    %1572 = vmatpush1.msra.mxu0 0.0
    %1573 = vmatprep.subr.mxu0 0.0
    %1574 = vmatpush1.msra.mxu0 0.0
    %1575 = vmatprep.subr.mxu0 0.0
    %1576 = vmatpush1.msra.mxu0 0.0
    %1577 = vmatprep.subr.mxu0 0.0
    %1578 = vmatpush1.msra.mxu0 0.0
    %1579 = vmatprep.subr.mxu0 0.0
    %1580 = vmatpush1.msra.mxu0 0.0
    %1581 = vmatprep.subr.mxu0 0.0
    %1582 = vmatpush1.msra.mxu0 0.0
    %1583 = vmatprep.subr.mxu0 0.0
    %1584 = vmatpush1.msra.mxu0 0.0
    %1585 = vmatprep.subr.mxu0 0.0
    %1586 = vmatpush1.msra.mxu0 0.0
    %1587 = vmatprep.subr.mxu0 0.0
    %1588 = vmatpush1.msra.mxu0 0.0
    %1589 = vmatprep.mubr.f32.mxu0 0.0
    %1590 = vmatmul.mubr.f32.gmra.mrb[0].mxu0 %v1520
    %v1591 = vpop.f32.mrb[0].mxu0
    %v1592 = vadd.f32 %v1518, %v1591
    %v1593 = vpop.f32.mrb[0].mxu0
    %1594 = vmatprep.mubr.f32.mxu0 0.0
    %1595 = vmatmul.mubr.f32.gmra.mrb[0].mxu0 %v1523
    %v1596 = vpop.f32.mrb[0].mxu0
    %v1597 = vadd.f32 %v1518, %v1596
    %v1598 = vpop.f32.mrb[0].mxu0
    %1599 = vdwg.mxu0
    %v1600 = vadd.f32 %v30, %v1592
    %v1601 = vadd.f32 %v31, %v1597
    %v1602 = vsel %vm43, %v1600, 0.0
    %1603 = vadd.xlane.f32.xlu0 %v1602
    %v1604 = vpop.xlane.xlu0 %1603
    %v1605 = vsel %vm43, %v1601, 0.0
    %1606 = vadd.xlane.f32.xlu0 %v1605
    %v1607 = vpop.xlane.xlu0 %1606
    %v1608 = vrcp.pop 32.0
    %v1609 = vmul.f32 %v1604, %v1608
    %v1610 = vmul.f32 %v1607, %v1608
    %v1611 = vsub.f32 %v1600, %v1609
    %v1612 = vsub.f32 %v1601, %v1610
    %v1613 = vmul.f32 %v1611, %v1611
    %v1614 = vmul.f32 %v1612, %v1612
    %v1615 = vsel %vm43, %v1613, 0.0
    %1616 = vadd.xlane.f32.xlu0 %v1615
    %v1617 = vpop.xlane.xlu0 %1616
    %v1618 = vsel %vm43, %v1614, 0.0
    %1619 = vadd.xlane.f32.xlu0 %v1618
    %v1620 = vpop.xlane.xlu0 %1619
    %v1621 = vmul.f32 %v1617, %v1608
    %v1622 = vmul.f32 %v1620, %v1608
    %v1623 = vadd.f32 %v1621, 1e-05
    %v1624 = vadd.f32 %v1622, 1e-05
    %v1625 = vrsqrt.pop %v1623
    %v1626 = vrsqrt.pop %v1624
    %v1627 = vmul.f32 %v1611, %v1625
    %v1628 = vmul.f32 %v1612, %v1626
    %v1629 = vlaneseq
    %v1630 = vshrl.u32 %v1629, 7
    %v1631 = vsub.s32 2, %v1630
    %v1632 = vrot.slane %v1514, %v1631
    %v1633 = vmul.f32 %v1627, %v1632
    %v1634 = vmul.f32 %v1628, %v1632
    %v1635 = vlaneseq
    %v1636 = vshrl.u32 %v1635, 7
    %v1637 = vsub.s32 3, %v1636
    %v1638 = vrot.slane %v1514, %v1637
    %v1639 = vadd.f32 %v1633, %v1638
    %v1640 = vadd.f32 %v1634, %v1638
    %v1641 = vld [vmem:[%s4] sm:$0xff]
    %v1642 = vld [vmem:[%s4 + $0x8] sm:$0xff]
    %v1643 = vld [vmem:[%s4 + $0x10] sm:$0xff]
    %v1644 = vld [vmem:[%s4 + $0x18] sm:$0xff]
    %v1645 = vld [vmem:[%s5] sm:$0x1]
    %v1647 = vlaneseq
    %v1648 = vshrl.u32 %v1647, 7
    %v1649 = vsub.s32 0, %v1648
    %v1650 = vrot.slane %v1645, %v1649
    %v1653 = vsel %vm43, %v1639, 0
    %v1656 = vsel %vm43, %v1640, 0
    %1658 = vmatprep.subr.mxu0 0.0
    %1659 = vmatpush1.msra.mxu0 %v1641
    %1660 = vmatprep.subr.mxu0 0.0
    %1661 = vmatpush1.msra.mxu0 %v1642
    %1662 = vmatprep.subr.mxu0 0.0
    %1663 = vmatpush1.msra.mxu0 %v1643
    %1664 = vmatprep.subr.mxu0 0.0
    %1665 = vmatpush1.msra.mxu0 %v1644
    %1666 = vmatprep.subr.mxu0 0.0
    %1667 = vmatpush1.msra.mxu0 0.0
    %1668 = vmatprep.subr.mxu0 0.0
    %1669 = vmatpush1.msra.mxu0 0.0
    %1670 = vmatprep.subr.mxu0 0.0
    %1671 = vmatpush1.msra.mxu0 0.0
    %1672 = vmatprep.subr.mxu0 0.0
    %1673 = vmatpush1.msra.mxu0 0.0
    %1674 = vmatprep.subr.mxu0 0.0
    %1675 = vmatpush1.msra.mxu0 0.0
    %1676 = vmatprep.subr.mxu0 0.0
    %1677 = vmatpush1.msra.mxu0 0.0
    %1678 = vmatprep.subr.mxu0 0.0
    %1679 = vmatpush1.msra.mxu0 0.0
    %1680 = vmatprep.subr.mxu0 0.0
    %1681 = vmatpush1.msra.mxu0 0.0
    %1682 = vmatprep.subr.mxu0 0.0
    %1683 = vmatpush1.msra.mxu0 0.0
    %1684 = vmatprep.subr.mxu0 0.0
    %1685 = vmatpush1.msra.mxu0 0.0
    %1686 = vmatprep.subr.mxu0 0.0
    %1687 = vmatpush1.msra.mxu0 0.0
    %1688 = vmatprep.subr.mxu0 0.0
    %1689 = vmatpush1.msra.mxu0 0.0
    %1690 = vmatprep.subr.mxu0 0.0
    %1691 = vmatpush1.msra.mxu0 0.0
    %1692 = vmatprep.subr.mxu0 0.0
    %1693 = vmatpush1.msra.mxu0 0.0
    %1694 = vmatprep.subr.mxu0 0.0
    %1695 = vmatpush1.msra.mxu0 0.0
    %1696 = vmatprep.subr.mxu0 0.0
    %1697 = vmatpush1.msra.mxu0 0.0
    %1698 = vmatprep.subr.mxu0 0.0
    %1699 = vmatpush1.msra.mxu0 0.0
    %1700 = vmatprep.subr.mxu0 0.0
    %1701 = vmatpush1.msra.mxu0 0.0
    %1702 = vmatprep.subr.mxu0 0.0
    %1703 = vmatpush1.msra.mxu0 0.0
    %1704 = vmatprep.subr.mxu0 0.0
    %1705 = vmatpush1.msra.mxu0 0.0
    %1706 = vmatprep.subr.mxu0 0.0
    %1707 = vmatpush1.msra.mxu0 0.0
    %1708 = vmatprep.subr.mxu0 0.0
    %1709 = vmatpush1.msra.mxu0 0.0
    %1710 = vmatprep.subr.mxu0 0.0
    %1711 = vmatpush1.msra.mxu0 0.0
    %1712 = vmatprep.subr.mxu0 0.0
    %1713 = vmatpush1.msra.mxu0 0.0
    %1714 = vmatprep.subr.mxu0 0.0
    %1715 = vmatpush1.msra.mxu0 0.0
    %1716 = vmatprep.subr.mxu0 0.0
    %1717 = vmatpush1.msra.mxu0 0.0
    %1718 = vmatprep.subr.mxu0 0.0
    %1719 = vmatpush1.msra.mxu0 0.0
    %1720 = vmatprep.subr.mxu0 0.0
    %1721 = vmatpush1.msra.mxu0 0.0
    %1722 = vmatprep.mubr.f32.mxu0 0.0
    %1723 = vmatmul.mubr.f32.gmra.mrb[0].mxu0 %v1653
    %v1724 = vpop.f32.mrb[0].mxu0
    %v1725 = vadd.f32 %v1650, %v1724
    %v1726 = vpop.f32.mrb[0].mxu0
    %1727 = vmatprep.mubr.f32.mxu0 0.0
    %1728 = vmatmul.mubr.f32.gmra.mrb[0].mxu0 %v1656
    %v1729 = vpop.f32.mrb[0].mxu0
    %v1730 = vadd.f32 %v1650, %v1729
    %v1731 = vpop.f32.mrb[0].mxu0
    %1732 = vdwg.mxu0
    %v1733 = vmax.f32 %v1725, 0.0
    %v1734 = vmax.f32 %v1730, 0.0
    %v1735 = vlaneseq
    %v1736 = vshrl.u32 %v1735, 7
    %v1737 = vsub.s32 1, %v1736
    %v1738 = vrot.slane %v1514, %v1737
    %vm1739 = vcmask 523264
    %v1741 = vsel %vm1739, %v1733, 0
    %v1744 = vsel %vm1739, %v1734, 0
    %1746 = vmatprep.subr.mxu0 0.0
    %1747 = vmatpush1.msra.mxu0 %v1506
    %1748 = vmatprep.subr.mxu0 0.0
    %1749 = vmatpush1.msra.mxu0 %v1507
    %1750 = vmatprep.subr.mxu0 0.0
    %1751 = vmatpush1.msra.mxu0 %v1508
    %1752 = vmatprep.subr.mxu0 0.0
    %1753 = vmatpush1.msra.mxu0 %v1509
    %1754 = vmatprep.subr.mxu0 0.0
    %1755 = vmatpush1.msra.mxu0 %v1510
    %1756 = vmatprep.subr.mxu0 0.0
    %1757 = vmatpush1.msra.mxu0 %v1511
    %1758 = vmatprep.subr.mxu0 0.0
    %1759 = vmatpush1.msra.mxu0 %v1512
    %1760 = vmatprep.subr.mxu0 0.0
    %1761 = vmatpush1.msra.mxu0 %v1513
    %1762 = vmatprep.subr.mxu0 0.0
    %1763 = vmatpush1.msra.mxu0 0.0
    %1764 = vmatprep.subr.mxu0 0.0
    %1765 = vmatpush1.msra.mxu0 0.0
    %1766 = vmatprep.subr.mxu0 0.0
    %1767 = vmatpush1.msra.mxu0 0.0
    %1768 = vmatprep.subr.mxu0 0.0
    %1769 = vmatpush1.msra.mxu0 0.0
    %1770 = vmatprep.subr.mxu0 0.0
    %1771 = vmatpush1.msra.mxu0 0.0
    %1772 = vmatprep.subr.mxu0 0.0
    %1773 = vmatpush1.msra.mxu0 0.0
    %1774 = vmatprep.subr.mxu0 0.0
    %1775 = vmatpush1.msra.mxu0 0.0
    %1776 = vmatprep.subr.mxu0 0.0
    %1777 = vmatpush1.msra.mxu0 0.0
    %1778 = vmatprep.subr.mxu0 0.0
    %1779 = vmatpush1.msra.mxu0 0.0
    %1780 = vmatprep.subr.mxu0 0.0
    %1781 = vmatpush1.msra.mxu0 0.0
    %1782 = vmatprep.subr.mxu0 0.0
    %1783 = vmatpush1.msra.mxu0 0.0
    %1784 = vmatprep.subr.mxu0 0.0
    %1785 = vmatpush1.msra.mxu0 0.0
    %1786 = vmatprep.subr.mxu0 0.0
    %1787 = vmatpush1.msra.mxu0 0.0
    %1788 = vmatprep.subr.mxu0 0.0
    %1789 = vmatpush1.msra.mxu0 0.0
    %1790 = vmatprep.subr.mxu0 0.0
    %1791 = vmatpush1.msra.mxu0 0.0
    %1792 = vmatprep.subr.mxu0 0.0
    %1793 = vmatpush1.msra.mxu0 0.0
    %1794 = vmatprep.subr.mxu0 0.0
    %1795 = vmatpush1.msra.mxu0 0.0
    %1796 = vmatprep.subr.mxu0 0.0
    %1797 = vmatpush1.msra.mxu0 0.0
    %1798 = vmatprep.subr.mxu0 0.0
    %1799 = vmatpush1.msra.mxu0 0.0
    %1800 = vmatprep.subr.mxu0 0.0
    %1801 = vmatpush1.msra.mxu0 0.0
    %1802 = vmatprep.subr.mxu0 0.0
    %1803 = vmatpush1.msra.mxu0 0.0
    %1804 = vmatprep.subr.mxu0 0.0
    %1805 = vmatpush1.msra.mxu0 0.0
    %1806 = vmatprep.subr.mxu0 0.0
    %1807 = vmatpush1.msra.mxu0 0.0
    %1808 = vmatprep.subr.mxu0 0.0
    %1809 = vmatpush1.msra.mxu0 0.0
    %1810 = vmatprep.mubr.f32.mxu0 0.0
    %1811 = vmatmul.mubr.f32.gmra.mrb[0].mxu0 %v1741
    %v1812 = vpop.f32.mrb[0].mxu0
    %v1813 = vadd.f32 %v1738, %v1812
    %v1814 = vpop.f32.mrb[0].mxu0
    %1815 = vmatprep.mubr.f32.mxu0 0.0
    %1816 = vmatmul.mubr.f32.gmra.mrb[0].mxu0 %v1744
    %v1817 = vpop.f32.mrb[0].mxu0
    %v1818 = vadd.f32 %v1738, %v1817
    %v1819 = vpop.f32.mrb[0].mxu0
    %1820 = vdwg.mxu0
    %v1821 = vadd.f32 %v1639, %v1813
    %v1822 = vadd.f32 %v1640, %v1818
    %v1823 = vsel %vm43, %v1821, 0.0
    %1824 = vadd.xlane.f32.xlu0 %v1823
    %v1825 = vpop.xlane.xlu0 %1824
    %v1826 = vsel %vm43, %v1822, 0.0
    %1827 = vadd.xlane.f32.xlu0 %v1826
    %v1828 = vpop.xlane.xlu0 %1827
    %v1829 = vmul.f32 %v1825, %v1608
    %v1830 = vmul.f32 %v1828, %v1608
    %v1831 = vsub.f32 %v1821, %v1829
    %v1832 = vsub.f32 %v1822, %v1830
    %v1833 = vmul.f32 %v1831, %v1831
    %v1834 = vmul.f32 %v1832, %v1832
    %v1835 = vsel %vm43, %v1833, 0.0
    %1836 = vadd.xlane.f32.xlu0 %v1835
    %v1837 = vpop.xlane.xlu0 %1836
    %v1838 = vsel %vm43, %v1834, 0.0
    %1839 = vadd.xlane.f32.xlu0 %v1838
    %v1840 = vpop.xlane.xlu0 %1839
    %v1841 = vmul.f32 %v1837, %v1608
    %v1842 = vmul.f32 %v1840, %v1608
    %v1843 = vadd.f32 %v1841, 1e-05
    %v1844 = vadd.f32 %v1842, 1e-05
    %v1845 = vrsqrt.pop %v1843
    %v1846 = vrsqrt.pop %v1844
    %v1847 = vmul.f32 %v1831, %v1845
    %v1848 = vmul.f32 %v1832, %v1846
    %v1849 = vlaneseq
    %v1850 = vshrl.u32 %v1849, 7
    %v1851 = vsub.s32 4, %v1850
    %v1852 = vrot.slane %v1514, %v1851
    %v1853 = vmul.f32 %v1847, %v1852
    %v1854 = vmul.f32 %v1848, %v1852
    %v1855 = vlaneseq
    %v1856 = vshrl.u32 %v1855, 7
    %v1857 = vsub.s32 5, %v1856
    %v1858 = vrot.slane %v1514, %v1857
    %v1859 = vadd.f32 %v1853, %v1858
    %v1860 = vadd.f32 %v1854, %v1858
    %1861 = vst.msk [vmem:[#allocation2] sm:$0xff] %vm43, %v1859
    %1862 = vst.msk [vmem:[#allocation2 + $0x8] sm:$0xff] %vm43, %v1860
    // Predicated region
    $region30: #{tpu_custom_call.1} parent=1 // pred_check
      _
    $region31: #{tpu_custom_call.1} parent=1 // pred_check_branch
      %1864 = sbr.rel (0) target = $region33
    $region32: #{tpu_custom_call.1} parent=1 // pred_region
      %s1866 = ssub.s32 256, 256
      %1867 = vsyncadd [#allocation3], %s1866
      %s1868 = sshll.u32 [#allocation2], 4
      %s1869 = int_to_ptr.vmem [resolvable:$true] %s1868
      %1874 = dma.vmem_to_hbm [thread:$0]  %s1869, 256, %s7, [#allocation3], 128, 128, 8
    $region33: #{tpu_custom_call.1} parent=1 // pred_fallthru
      _
    // Predicated region
    $region34: #{tpu_custom_call.1} parent=1 // pred_check
      _
    $region35: #{tpu_custom_call.1} parent=1 // pred_check_branch
      %1876 = sbr.rel (0) target = $region37
    $region36: #{tpu_custom_call.1} parent=1 // pred_region
      %s1878 = ssub.s32 256, 256
      %1879 = vsyncadd [#allocation5], %s1878
      %s1880 = sshll.u32 [#allocation4], 4
      %s1881 = int_to_ptr.vmem [resolvable:$true] %s1880
      %1886 = dma.vmem_to_hbm [thread:$0]  %s1881, 256, %s8, [#allocation5], 128, 128, 8
    $region37: #{tpu_custom_call.1} parent=1 // pred_fallthru
      _
    // Predicated region
    $region38: #{tpu_custom_call.1} parent=1 // pred_check
      _
    $region39: #{tpu_custom_call.1} parent=1 // pred_check_branch
      %1888 = sbr.rel (0) target = $region41
    $region40: #{tpu_custom_call.1} parent=1 // pred_region
      %1889 = dma.done [#allocation3], 256
    $region41: #{tpu_custom_call.1} parent=1 // pred_fallthru
      _
    // Predicated region
    $region42: #{tpu_custom_call.1} parent=1 // pred_check
      _
    $region43: #{tpu_custom_call.1} parent=1 // pred_check_branch
      %1891 = sbr.rel (0) target = $region45
    $region44: #{tpu_custom_call.1} parent=1 // pred_region
      %1892 = dma.done [#allocation5], 256
    $region45: #{tpu_custom_call.1} parent=1 // pred_fallthru
      _
    %1893 = vsyncpa [#allocation3], 1
    %1894 = vsyncpa [#allocation5], 1

</llo_original>
